<compile_context>
chip_gen: v5e
topology: v5e:2x2
jax: 0.10.0
libtpu: 0.0.40
codegen_flags: <defaults>
</compile_context>

<pallas_src>
import functools

import numpy as np
import jax
import jax.numpy as jnp
from jax.experimental import pallas as pl
from jax.experimental.pallas import tpu as pltpu


# ----------------------------- tiling helpers -------------------------------- #

def _tpu_min_steps():
    """>=4 grid steps on dual-TensorCore v7x (2 per core after 'parallel' split);
    1 on single-TC v5e/v6e (grid is a serial loop there, extra steps = overhead)."""
    try:
        kind = jax.devices()[0].device_kind.lower()
    except Exception:
        return 1
    return 4 if ("v7" in kind or "tpu7" in kind) else 1


def _choose_blk(n, width, *, min_steps, vmem_budget_bytes=6 * 1024 * 1024,
                target=2048):
    """Pixel (lane-axis) tile: largest multiple of 128 dividing n, <= target,
    whose double-buffered activation working set stays under the budget and
    which leaves >= min_steps grid steps.  Falls back to the full extent."""
    if n % 128 != 0:
        return n  # full-extent block (block dim == array dim is always legal)

    def working_set(blk):
        # combine kernel (largest): y f32 + h bf16 (in) + hnew bf16 + z f32 (out)
        # + taper/inv_taper f32, all double-buffered.
        return 2 * blk * (12 * width + 8)

    divs = [c for c in range(128, min(n, target) + 1, 128) if n % c == 0]
    ok = [c for c in divs
          if n // c >= min_steps and working_set(c) <= vmem_budget_bytes]
    if ok:
        return max(ok)
    if divs:
        return min(divs)
    return n


# ----------------------------- Pallas kernels ------------------------------- #
# Layout: activations are (channels, pixels); pixels = lane axis (lane-dense).

def _lift_layer_kernel(x_ref, fc0_ref, w1_ref, w2_ref, taper_ref, h_ref, z_ref):
    # h = fc0 @ x   (embed_ratio scale folded into fc0)        -> stored bf16
    # z = (W2 @ tanh(W1 @ h)) * taper                           -> stored f32
    h = jnp.dot(fc0_ref[...], x_ref[...].astype(jnp.bfloat16),
                preferred_element_type=jnp.float32)
    h_bf = h.astype(jnp.bfloat16)
    h_ref[...] = h_bf
    t = jnp.tanh(jnp.dot(w1_ref[...], h_bf, preferred_element_type=jnp.float32))
    z = jnp.dot(w2_ref[...], t.astype(jnp.bfloat16),
                preferred_element_type=jnp.float32)
    z_ref[...] = z * taper_ref[...]


def _combine_layer_kernel(gate_ref, y_ref, h_ref, w1_ref, w2_ref,
                          taper_ref, inv_taper_ref, hnew_ref, z_ref):
    # y      = y_raw / taper                    (inv_taper folded in)
    # h_new  = (1 - g) * y + g * h_prev         (combine of layer i)   -> bf16
    # z      = (W2 @ tanh(W1 @ h_new)) * taper  (W-path of layer i+1)  -> f32
    g = gate_ref[0]                                      # SMEM scalar
    y = y_ref[...] * inv_taper_ref[...]
    h_new = (1.0 - g) * y + g * h_ref[...].astype(jnp.float32)
    h_bf = h_new.astype(jnp.bfloat16)
    hnew_ref[...] = h_bf
    t = jnp.tanh(jnp.dot(w1_ref[...], h_bf, preferred_element_type=jnp.float32))
    z = jnp.dot(w2_ref[...], t.astype(jnp.bfloat16),
                preferred_element_type=jnp.float32)
    z_ref[...] = z * taper_ref[...]


def _final_layer_kernel(gate_ref, y_ref, h_ref, fc1_ref, inv_taper_ref, out_ref):
    # last combine + fc1 projection (1/sqrt(embed_ratio) folded into fc1)
    g = gate_ref[0]
    y = y_ref[...] * inv_taper_ref[...]
    h_final = (1.0 - g) * y + g * h_ref[...].astype(jnp.float32)
    out_ref[...] = jnp.dot(fc1_ref[...], h_final.astype(jnp.bfloat16),
                           preferred_element_type=jnp.float32)


# ----------------------------- Pallas wrappers ------------------------------ #
# NOTE: weight index_maps are constant; pipeline_mode=pl.Buffered(1) would
# single-buffer them, but at width=32 the saving is negligible, so we keep the
# default (guaranteed-supported) double buffering.

def pallas_lift_layer(x_cf, fc0, w1, w2, taper_pix, blk):
    cin, n = x_cf.shape
    width = fc0.shape[0]
    assert n % blk == 0
    return pl.pallas_call(
        _lift_layer_kernel,
        out_shape=(jax.ShapeDtypeStruct((width, n), jnp.bfloat16),   # hcur
                   jax.ShapeDtypeStruct((width, n), jnp.float32)),   # z * taper
        grid=(n // blk,),
        in_specs=[pl.BlockSpec((cin, blk), lambda i: (0, i)),
                  pl.BlockSpec((width, cin), lambda i: (0, 0)),
                  pl.BlockSpec((width, width), lambda i: (0, 0)),
                  pl.BlockSpec((width, width), lambda i: (0, 0)),
                  pl.BlockSpec((1, blk), lambda i: (0, i))],
        out_specs=(pl.BlockSpec((width, blk), lambda i: (0, i)),
                   pl.BlockSpec((width, blk), lambda i: (0, i))),
        compiler_params=pltpu.CompilerParams(dimension_semantics=("parallel",)),
    )(x_cf, fc0, w1, w2, taper_pix)


def pallas_combine_layer(gate, y, h, w1, w2, taper_pix, inv_taper_pix, blk):
    width, n = y.shape
    assert n % blk == 0
    return pl.pallas_call(
        _combine_layer_kernel,
        out_shape=(jax.ShapeDtypeStruct((width, n), jnp.bfloat16),   # hcur
                   jax.ShapeDtypeStruct((width, n), jnp.float32)),   # z * taper
        grid=(n // blk,),
        in_specs=[pl.BlockSpec(memory_space=pltpu.MemorySpace.SMEM),  # gate
                  pl.BlockSpec((width, blk), lambda i: (0, i)),
                  pl.BlockSpec((width, blk), lambda i: (0, i)),
                  pl.BlockSpec((width, width), lambda i: (0, 0)),
                  pl.BlockSpec((width, width), lambda i: (0, 0)),
                  pl.BlockSpec((1, blk), lambda i: (0, i)),
                  pl.BlockSpec((1, blk), lambda i: (0, i))],
        out_specs=(pl.BlockSpec((width, blk), lambda i: (0, i)),
                   pl.BlockSpec((width, blk), lambda i: (0, i))),
        compiler_params=pltpu.CompilerParams(dimension_semantics=("parallel",)),
    )(gate, y, h, w1, w2, taper_pix, inv_taper_pix)


def pallas_final_layer(gate, y, h, fc1, inv_taper_pix, blk):
    width, n = y.shape
    out_dim = fc1.shape[0]
    assert n % blk == 0
    return pl.pallas_call(
        _final_layer_kernel,
        out_shape=jax.ShapeDtypeStruct((out_dim, n), jnp.float32),
        grid=(n // blk,),
        in_specs=[pl.BlockSpec(memory_space=pltpu.MemorySpace.SMEM),  # gate
                  pl.BlockSpec((width, blk), lambda i: (0, i)),
                  pl.BlockSpec((width, blk), lambda i: (0, i)),
                  pl.BlockSpec((out_dim, width), lambda i: (0, 0)),
                  pl.BlockSpec((1, blk), lambda i: (0, i))],
        out_specs=pl.BlockSpec((out_dim, blk), lambda i: (0, i)),
        compiler_params=pltpu.CompilerParams(dimension_semantics=("parallel",)),
    )(gate, y, h, fc1, inv_taper_pix)


# ------------------------------ JAX glue ------------------------------------ #

def spectral_conv_cfirst(z_cbhw, w12, m1, m2):
    """Standard FNO spectral conv, channels-first (cin, b, h, w) — matches the
    (C, N) Pallas layout with a free reshape (no transpose).  Input is already
    taper-multiplied; 1/taper is applied downstream in the next Pallas kernel."""
    cin, b, h, w = z_cbhw.shape
    cout = w12.shape[2]
    assert h >= 2 * m1, "spectral conv requires h >= 2*m1 (mode blocks overlap)"
    x_ft = jnp.fft.rfft2(z_cbhw, axes=(2, 3))                 # (cin, b, h, w//2+1)
    x_sel = jnp.stack([x_ft[:, :, :m1, :m2],
                       x_ft[:, :, -m1:, :m2]], axis=0)        # (2, cin, b, m1, m2)
    mixed = jnp.einsum('sibxy,sioxy->sobxy', x_sel, w12)      # (2, cout, b, m1, m2)
    pad_w = w // 2 + 1 - m2
    mixed = jnp.pad(mixed, ((0, 0), (0, 0), (0, 0), (0, 0), (0, pad_w)))
    mid = jnp.zeros((cout, b, h - 2 * m1, w // 2 + 1), dtype=jnp.complex64)
    out_ft = jnp.concatenate([mixed[0], mid, mixed[1]], axis=2)
    return jnp.fft.irfft2(out_ft, s=(h, w), axes=(2, 3))      # (cout, b, h, w)


def _spectral_normalize(w_2d):
    """Exact W / sigma_max(W) (limit of torch.nn.utils.spectral_norm)."""
    w_np = np.asarray(w_2d, dtype=np.float64)
    sigma = np.linalg.svd(w_np, compute_uv=False)[0]
    return (w_np / sigma).astype(np.float32)


def init_params(key, *, in_dim, width, out_dim, n_layers, m1, m2, nlats):
    keys = jax.random.split(key, 2 + n_layers)
    embed_ratio = width / in_dim

    # fc0: Linear(in_dim, width, bias=False), spectral-normed, * sqrt(embed_ratio)
    # stored as (out, in) so it is applied as fc0 @ x in the transposed layout.
    w_fc0 = 0.1 * np.asarray(jax.random.normal(keys[0], (width, in_dim)))
    fc0 = jnp.asarray(_spectral_normalize(w_fc0) * np.sqrt(embed_ratio),
                      dtype=jnp.float32)

    # fc1: Linear(width, out_dim, bias=False), spectral-normed, / sqrt(embed_ratio)
    w_fc1 = 0.1 * np.asarray(jax.random.normal(keys[1], (out_dim, width)))
    fc1 = jnp.asarray(_spectral_normalize(w_fc1) / np.sqrt(embed_ratio),
                      dtype=jnp.float32)

    ws, w2s, sp_w = [], [], []
    scale = 1.0 / (width * width)
    for i in range(n_layers):
        k0, k1, k2, k3 = jax.random.split(keys[2 + i], 4)
        # 1x1 convs (bias=False) -> (out, in) matrices applied as W @ x.
        w_conv = 0.1 * np.asarray(jax.random.normal(k0, (width, width)))
        w2_conv = 0.1 * np.asarray(jax.random.normal(k1, (width, width)))
        ws.append(jnp.asarray(_spectral_normalize(w_conv), dtype=jnp.float32))
        w2s.append(jnp.asarray(_spectral_normalize(w2_conv), dtype=jnp.float32))
        # SpectralConv2dV2 complex weights: scale * rand(in, out, m1, m2, cfloat),
        # stacked (weights1, weights2) for one batched contraction per layer.
        re1 = jax.random.uniform(k2, (width, width, m1, m2))
        im1 = jax.random.uniform(jax.random.fold_in(k2, 1), (width, width, m1, m2))
        re2 = jax.random.uniform(k3, (width, width, m1, m2))
        im2 = jax.random.uniform(jax.random.fold_in(k3, 1), (width, width, m1, m2))
        w1c = (scale * (re1 + 1j * im1)).astype(jnp.complex64)
        w2c = (scale * (re2 + 1j * im2)).astype(jnp.complex64)
        sp_w.append(jnp.stack([w1c, w2c], axis=0))

    # taper (dfs_type='lite'): sin(linspace(delta, pi - delta, nlats)); never zero
    delta = 1.0 / (nlats + 1) / 2.0
    taper = np.sin(np.linspace(delta, np.pi - delta, nlats)).astype(np.float32)

    # gates: nn.Parameter(0.0) -> sigmoid(0) = 0.5, shipped as SMEM scalars
    gates = jnp.full((n_layers, 1), 1.0 / (1.0 + np.exp(0.0)), dtype=jnp.float32)

    return dict(fc0=fc0, fc1=fc1, ws=ws, w2s=w2s, sp_w=sp_w,
                taper=jnp.asarray(taper), inv_taper=jnp.asarray(1.0 / taper),
                gates=gates)


def fnn2d_forward(x, params, *, m1, m2, dt_ind=None):
    """(b, c, h, w) -> (b, 1, h, w); matches FNN2d.forward in training mode."""
    del dt_ind                                   # use_embedding=False
    b, cin, h, w = x.shape
    n = b * h * w
    width = params['fc0'].shape[0]
    n_layers = len(params['ws'])
    blk = _choose_blk(n, width, min_steps=_tpu_min_steps())

    # weights: bf16 at rest, cast ONCE here (not per grid step in the kernels)
    fc0_bf = params['fc0'].astype(jnp.bfloat16)
    fc1_bf = params['fc1'].astype(jnp.bfloat16)
    w1s_bf = [wm.astype(jnp.bfloat16) for wm in params['ws']]
    w2s_bf = [wm.astype(jnp.bfloat16) for wm in params['w2s']]

    # only relayout in the whole network: (b,cin,h,w) -> (cin, b*h*w), cin=3
    x_cf = jnp.transpose(x, (1, 0, 2, 3)).reshape(cin, n).astype(jnp.float32)

    # taper / 1/taper as per-pixel lane vectors, consumed inside the kernels
    taper_pix = jnp.broadcast_to(params['taper'][None, :, None],
                                 (b, h, w)).reshape(1, n).astype(jnp.float32)
    inv_taper_pix = jnp.broadcast_to(params['inv_taper'][None, :, None],
                                     (b, h, w)).reshape(1, n).astype(jnp.float32)

    # layer 0: fused lift (fc0) + W-path (+ taper)  (Pallas)
    hcur, z = pallas_lift_layer(x_cf, fc0_bf, w1s_bf[0], w2s_bf[0],
                                taper_pix, blk)

    out = None
    for i in range(n_layers):
        # spectral conv of layer i — channels-first FFT glue, free reshape only
        y = spectral_conv_cfirst(z.reshape(width, b, h, w),
                                 params['sp_w'][i], m1, m2).reshape(width, n)
        gate = params['gates'][i]                            # (1,) f32 SMEM scalar
        if i + 1 < n_layers:
            # fused: 1/taper + combine(i) + W-path(i+1) + taper  (Pallas)
            hcur, z = pallas_combine_layer(gate, y, hcur, w1s_bf[i + 1],
                                           w2s_bf[i + 1], taper_pix,
                                           inv_taper_pix, blk)
        else:
            # fused: 1/taper + last combine + fc1 projection  (Pallas, lane-dense)
            out = pallas_final_layer(gate, y, hcur, fc1_bf, inv_taper_pix, blk)

    out_dim = params['fc1'].shape[0]
    return jnp.transpose(out.reshape(out_dim, b, h, w), (1, 0, 2, 3))


def fnn2d_forward_ref(x, params, *, m1, m2, dt_ind=None):
    """Pure-f32 XLA reference (same math, no Pallas / no bf16) for validation."""
    del dt_ind
    b, cin, h, w = x.shape
    n = b * h * w
    width = params['fc0'].shape[0]
    n_layers = len(params['ws'])
    xf = jnp.transpose(x, (1, 0, 2, 3)).reshape(cin, n).astype(jnp.float32)
    taper_pix = jnp.broadcast_to(params['taper'][None, :, None],
                                 (b, h, w)).reshape(1, n)
    inv_taper_pix = jnp.broadcast_to(params['inv_taper'][None, :, None],
                                     (b, h, w)).reshape(1, n)
    hcur = params['fc0'] @ xf
    for i in range(n_layers):
        z = params['w2s'][i] @ jnp.tanh(params['ws'][i] @ hcur)
        zt = (z * taper_pix).reshape(width, b, h, w)
        y = spectral_conv_cfirst(zt, params['sp_w'][i], m1, m2).reshape(width, n)
        y = y * inv_taper_pix
        g = params['gates'][i][0]
        hcur = (1.0 - g) * y + g * hcur
    out = params['fc1'] @ hcur
    out_dim = params['fc1'].shape[0]
    return jnp.transpose(out.reshape(out_dim, b, h, w), (1, 0, 2, 3))


# --------------------------------- main ------------------------------------- #

if __name__ == "__main__":
    B, IN_DIM, H, W = 2, 3, 16, 16
    WIDTH, OUT_DIM, N_LAYERS = 32, 1, 3          # layers=[32,32,32,32] -> 3 blocks
    M1, M2 = 4, 4                                # modes1=modes2=[4,4,4]

    key = jax.random.PRNGKey(0)
    kx, kp = jax.random.split(key)
    x = jax.random.normal(kx, (B, IN_DIM, H, W), dtype=jnp.float32)

    params = init_params(kp, in_dim=IN_DIM, width=WIDTH, out_dim=OUT_DIM,
                         n_layers=N_LAYERS, m1=M1, m2=M2, nlats=H)

    fwd = jax.jit(functools.partial(fnn2d_forward, m1=M1, m2=M2))
    out = jax.block_until_ready(fwd(x, params))

    assert out.shape == (B, OUT_DIM, H, W), out.shape
    assert bool(jnp.all(jnp.isfinite(out)))

    # tolerance test of the bf16-at-the-dot / bf16-carry Pallas path vs pure f32
    ref = jax.block_until_ready(
        jax.jit(functools.partial(fnn2d_forward_ref, m1=M1, m2=M2))(x, params))
    max_err = float(jnp.max(jnp.abs(out - ref)))
    scale = float(jnp.max(jnp.abs(ref))) + 1e-6
    assert max_err <= 0.1 * scale, (max_err, scale)

    print("KERNEL_OK")
</pallas_src>

<mosaic_0001>
module attributes {stable_mosaic.version = 11 : i64} {
  func.func @_lift_layer_kernel(%arg0: i32, %arg1: memref<3x512xf32, #tpu.memory_space<vmem>>, %arg2: memref<32x3xbf16, #tpu.memory_space<vmem>>, %arg3: memref<32x32xbf16, #tpu.memory_space<vmem>>, %arg4: memref<32x32xbf16, #tpu.memory_space<vmem>>, %arg5: memref<1x512xf32, #tpu.memory_space<vmem>>, %arg6: memref<32x512xbf16, #tpu.memory_space<vmem>>, %arg7: memref<32x512xf32, #tpu.memory_space<vmem>>) attributes {dimension_semantics = [#tpu.dimension_semantics<parallel>], iteration_bounds = array<i64: 1>, scalar_prefetch = 0 : i64, scratch_operands = 0 : i64, tpu.core_type = #tpu.core_type<tc>, window_params = [{transform_indices = @transform_0, window_bounds = array<i64: 3, 512>}, {pipeline_mode = #tpu.pipeline_mode<synchronous>, transform_indices = @transform_1, window_bounds = array<i64: 32, 3>}, {pipeline_mode = #tpu.pipeline_mode<synchronous>, transform_indices = @transform_2, window_bounds = array<i64: 32, 32>}, {pipeline_mode = #tpu.pipeline_mode<synchronous>, transform_indices = @transform_3, window_bounds = array<i64: 32, 32>}, {transform_indices = @transform_4, window_bounds = array<i64: 1, 512>}, {transform_indices = @transform_5, window_bounds = array<i64: 32, 512>}, {transform_indices = @transform_6, window_bounds = array<i64: 32, 512>}]} {
    %c0 = arith.constant 0 : index
    %c0_0 = arith.constant 0 : index
    %0 = vector.load %arg2[%c0, %c0_0] : memref<32x3xbf16, #tpu.memory_space<vmem>>, vector<32x3xbf16>
    %c0_1 = arith.constant 0 : index
    %c0_2 = arith.constant 0 : index
    %1 = vector.load %arg1[%c0_1, %c0_2] : memref<3x512xf32, #tpu.memory_space<vmem>>, vector<3x512xf32>
    %2 = arith.truncf %1 : vector<3x512xf32> to vector<3x512xbf16>
    %cst = arith.constant dense<0.000000e+00> : vector<32x512xf32>
    %3 = tpu.matmul %0, %2, %cst {dimension_numbers = #tpu.dot_dimension_numbers<[1], [0], [0], [1], [0, 0, 1, 1], [], []>} : vector<32x3xbf16>, vector<3x512xbf16>, vector<32x512xf32> -> vector<32x512xf32>
    %4 = arith.truncf %3 : vector<32x512xf32> to vector<32x512xbf16>
    %c0_3 = arith.constant 0 : index
    %c0_4 = arith.constant 0 : index
    %5 = vector.load %arg6[%c0_3, %c0_4] : memref<32x512xbf16, #tpu.memory_space<vmem>>, vector<32x512xbf16>
    tpu.vector_store %arg6[%c0_3, %c0_4], %4 {strides = array<i32>} : memref<32x512xbf16, #tpu.memory_space<vmem>>, vector<32x512xbf16>,
    %c0_5 = arith.constant 0 : index
    %c0_6 = arith.constant 0 : index
    %6 = vector.load %arg3[%c0_5, %c0_6] : memref<32x32xbf16, #tpu.memory_space<vmem>>, vector<32x32xbf16>
    %cst_7 = arith.constant dense<0.000000e+00> : vector<32x512xf32>
    %7 = tpu.matmul %6, %4, %cst_7 {dimension_numbers = #tpu.dot_dimension_numbers<[1], [0], [0], [1], [0, 0, 1, 1], [], []>} : vector<32x32xbf16>, vector<32x512xbf16>, vector<32x512xf32> -> vector<32x512xf32>
    %8 = math.tanh %7 : vector<32x512xf32>
    %c0_8 = arith.constant 0 : index
    %c0_9 = arith.constant 0 : index
    %9 = vector.load %arg4[%c0_8, %c0_9] : memref<32x32xbf16, #tpu.memory_space<vmem>>, vector<32x32xbf16>
    %10 = arith.truncf %8 : vector<32x512xf32> to vector<32x512xbf16>
    %cst_10 = arith.constant dense<0.000000e+00> : vector<32x512xf32>
    %11 = tpu.matmul %9, %10, %cst_10 {dimension_numbers = #tpu.dot_dimension_numbers<[1], [0], [0], [1], [0, 0, 1, 1], [], []>} : vector<32x32xbf16>, vector<32x512xbf16>, vector<32x512xf32> -> vector<32x512xf32>
    %c0_11 = arith.constant 0 : index
    %c0_12 = arith.constant 0 : index
    %12 = vector.load %arg5[%c0_11, %c0_12] : memref<1x512xf32, #tpu.memory_space<vmem>>, vector<1x512xf32>
    %13 = vector.broadcast %12 : vector<1x512xf32> to vector<32x512xf32>
    %14 = arith.mulf %11, %13 : vector<32x512xf32>
    %c0_13 = arith.constant 0 : index
    %c0_14 = arith.constant 0 : index
    %15 = vector.load %arg7[%c0_13, %c0_14] : memref<32x512xf32, #tpu.memory_space<vmem>>, vector<32x512xf32>
    tpu.vector_store %arg7[%c0_13, %c0_14], %14 {strides = array<i32>} : memref<32x512xf32, #tpu.memory_space<vmem>>, vector<32x512xf32>,
    return
  }
  func.func @transform_0(%arg0: i32) -> (i32, i32) {
    %c0_i32 = arith.constant 0 : i32
    %c0_i32_0 = arith.constant 0 : i32
    return %c0_i32, %arg0 : i32, i32
  }
  func.func @transform_1(%arg0: i32) -> (i32, i32) {
    %c0_i32 = arith.constant 0 : i32
    %c0_i32_0 = arith.constant 0 : i32
    %c0_i32_1 = arith.constant 0 : i32
    return %c0_i32, %c0_i32_0 : i32, i32
  }
  func.func @transform_2(%arg0: i32) -> (i32, i32) {
    %c0_i32 = arith.constant 0 : i32
    %c0_i32_0 = arith.constant 0 : i32
    %c0_i32_1 = arith.constant 0 : i32
    return %c0_i32, %c0_i32_0 : i32, i32
  }
  func.func @transform_3(%arg0: i32) -> (i32, i32) {
    %c0_i32 = arith.constant 0 : i32
    %c0_i32_0 = arith.constant 0 : i32
    %c0_i32_1 = arith.constant 0 : i32
    return %c0_i32, %c0_i32_0 : i32, i32
  }
  func.func @transform_4(%arg0: i32) -> (i32, i32) {
    %c0_i32 = arith.constant 0 : i32
    %c0_i32_0 = arith.constant 0 : i32
    return %c0_i32, %arg0 : i32, i32
  }
  func.func @transform_5(%arg0: i32) -> (i32, i32) {
    %c0_i32 = arith.constant 0 : i32
    %c0_i32_0 = arith.constant 0 : i32
    return %c0_i32, %arg0 : i32, i32
  }
  func.func @transform_6(%arg0: i32) -> (i32, i32) {
    %c0_i32 = arith.constant 0 : i32
    %c0_i32_0 = arith.constant 0 : i32
    return %c0_i32, %arg0 : i32, i32
  }
}

module attributes {stable_mosaic.version = 11 : i64} {
  func.func @_combine_layer_kernel(%arg0: i32, %arg1: memref<1xf32, #tpu.memory_space<smem>>, %arg2: memref<32x512xf32, #tpu.memory_space<vmem>>, %arg3: memref<32x512xbf16, #tpu.memory_space<vmem>>, %arg4: memref<32x32xbf16, #tpu.memory_space<vmem>>, %arg5: memref<32x32xbf16, #tpu.memory_space<vmem>>, %arg6: memref<1x512xf32, #tpu.memory_space<vmem>>, %arg7: memref<1x512xf32, #tpu.memory_space<vmem>>, %arg8: memref<32x512xbf16, #tpu.memory_space<vmem>>, %arg9: memref<32x512xf32, #tpu.memory_space<vmem>>) attributes {dimension_semantics = [#tpu.dimension_semantics<parallel>], iteration_bounds = array<i64: 1>, scalar_prefetch = 0 : i64, scratch_operands = 0 : i64, tpu.core_type = #tpu.core_type<tc>, window_params = [{transform_indices = @transform_0, window_bounds = array<i64: 1>}, {transform_indices = @transform_1, window_bounds = array<i64: 32, 512>}, {transform_indices = @transform_2, window_bounds = array<i64: 32, 512>}, {pipeline_mode = #tpu.pipeline_mode<synchronous>, transform_indices = @transform_3, window_bounds = array<i64: 32, 32>}, {pipeline_mode = #tpu.pipeline_mode<synchronous>, transform_indices = @transform_4, window_bounds = array<i64: 32, 32>}, {transform_indices = @transform_5, window_bounds = array<i64: 1, 512>}, {transform_indices = @transform_6, window_bounds = array<i64: 1, 512>}, {transform_indices = @transform_7, window_bounds = array<i64: 32, 512>}, {transform_indices = @transform_8, window_bounds = array<i64: 32, 512>}]} {
    %c0 = arith.constant 0 : index
    %0 = memref.load %arg1[%c0] : memref<1xf32, #tpu.memory_space<smem>>
    %c0_0 = arith.constant 0 : index
    %c0_1 = arith.constant 0 : index
    %1 = vector.load %arg2[%c0_0, %c0_1] : memref<32x512xf32, #tpu.memory_space<vmem>>, vector<32x512xf32>
    %c0_2 = arith.constant 0 : index
    %c0_3 = arith.constant 0 : index
    %2 = vector.load %arg7[%c0_2, %c0_3] : memref<1x512xf32, #tpu.memory_space<vmem>>, vector<1x512xf32>
    %3 = vector.broadcast %2 : vector<1x512xf32> to vector<32x512xf32>
    %4 = arith.mulf %1, %3 : vector<32x512xf32>
    %cst = arith.constant 1.000000e+00 : f32
    %5 = arith.subf %cst, %0 : f32
    %6 = vector.broadcast %5 : f32 to vector<32x512xf32>
    %7 = arith.mulf %6, %4 : vector<32x512xf32>
    %c0_4 = arith.constant 0 : index
    %c0_5 = arith.constant 0 : index
    %8 = vector.load %arg3[%c0_4, %c0_5] : memref<32x512xbf16, #tpu.memory_space<vmem>>, vector<32x512xbf16>
    %9 = arith.extf %8 : vector<32x512xbf16> to vector<32x512xf32>
    %10 = vector.broadcast %0 : f32 to vector<32x512xf32>
    %11 = arith.mulf %10, %9 : vector<32x512xf32>
    %12 = arith.addf %7, %11 : vector<32x512xf32>
    %13 = arith.truncf %12 : vector<32x512xf32> to vector<32x512xbf16>
    %c0_6 = arith.constant 0 : index
    %c0_7 = arith.constant 0 : index
    %14 = vector.load %arg8[%c0_6, %c0_7] : memref<32x512xbf16, #tpu.memory_space<vmem>>, vector<32x512xbf16>
    tpu.vector_store %arg8[%c0_6, %c0_7], %13 {strides = array<i32>} : memref<32x512xbf16, #tpu.memory_space<vmem>>, vector<32x512xbf16>,
    %c0_8 = arith.constant 0 : index
    %c0_9 = arith.constant 0 : index
    %15 = vector.load %arg4[%c0_8, %c0_9] : memref<32x32xbf16, #tpu.memory_space<vmem>>, vector<32x32xbf16>
    %cst_10 = arith.constant dense<0.000000e+00> : vector<32x512xf32>
    %16 = tpu.matmul %15, %13, %cst_10 {dimension_numbers = #tpu.dot_dimension_numbers<[1], [0], [0], [1], [0, 0, 1, 1], [], []>} : vector<32x32xbf16>, vector<32x512xbf16>, vector<32x512xf32> -> vector<32x512xf32>
    %17 = math.tanh %16 : vector<32x512xf32>
    %c0_11 = arith.constant 0 : index
    %c0_12 = arith.constant 0 : index
    %18 = vector.load %arg5[%c0_11, %c0_12] : memref<32x32xbf16, #tpu.memory_space<vmem>>, vector<32x32xbf16>
    %19 = arith.truncf %17 : vector<32x512xf32> to vector<32x512xbf16>
    %cst_13 = arith.constant dense<0.000000e+00> : vector<32x512xf32>
    %20 = tpu.matmul %18, %19, %cst_13 {dimension_numbers = #tpu.dot_dimension_numbers<[1], [0], [0], [1], [0, 0, 1, 1], [], []>} : vector<32x32xbf16>, vector<32x512xbf16>, vector<32x512xf32> -> vector<32x512xf32>
    %c0_14 = arith.constant 0 : index
    %c0_15 = arith.constant 0 : index
    %21 = vector.load %arg6[%c0_14, %c0_15] : memref<1x512xf32, #tpu.memory_space<vmem>>, vector<1x512xf32>
    %22 = vector.broadcast %21 : vector<1x512xf32> to vector<32x512xf32>
    %23 = arith.mulf %20, %22 : vector<32x512xf32>
    %c0_16 = arith.constant 0 : index
    %c0_17 = arith.constant 0 : index
    %24 = vector.load %arg9[%c0_16, %c0_17] : memref<32x512xf32, #tpu.memory_space<vmem>>, vector<32x512xf32>
    tpu.vector_store %arg9[%c0_16, %c0_17], %23 {strides = array<i32>} : memref<32x512xf32, #tpu.memory_space<vmem>>, vector<32x512xf32>,
    return
  }
  func.func @transform_0(%arg0: i32) -> i32 {
    %c0_i32 = arith.constant 0 : i32
    %c0_i32_0 = arith.constant 0 : i32
    return %c0_i32 : i32
  }
  func.func @transform_1(%arg0: i32) -> (i32, i32) {
    %c0_i32 = arith.constant 0 : i32
    %c0_i32_0 = arith.constant 0 : i32
    return %c0_i32, %arg0 : i32, i32
  }
  func.func @transform_2(%arg0: i32) -> (i32, i32) {
    %c0_i32 = arith.constant 0 : i32
    %c0_i32_0 = arith.constant 0 : i32
    return %c0_i32, %arg0 : i32, i32
  }
  func.func @transform_3(%arg0: i32) -> (i32, i32) {
    %c0_i32 = arith.constant 0 : i32
    %c0_i32_0 = arith.constant 0 : i32
    %c0_i32_1 = arith.constant 0 : i32
    return %c0_i32, %c0_i32_0 : i32, i32
  }
  func.func @transform_4(%arg0: i32) -> (i32, i32) {
    %c0_i32 = arith.constant 0 : i32
    %c0_i32_0 = arith.constant 0 : i32
    %c0_i32_1 = arith.constant 0 : i32
    return %c0_i32, %c0_i32_0 : i32, i32
  }
  func.func @transform_5(%arg0: i32) -> (i32, i32) {
    %c0_i32 = arith.constant 0 : i32
    %c0_i32_0 = arith.constant 0 : i32
    return %c0_i32, %arg0 : i32, i32
  }
  func.func @transform_6(%arg0: i32) -> (i32, i32) {
    %c0_i32 = arith.constant 0 : i32
    %c0_i32_0 = arith.constant 0 : i32
    return %c0_i32, %arg0 : i32, i32
  }
  func.func @transform_7(%arg0: i32) -> (i32, i32) {
    %c0_i32 = arith.constant 0 : i32
    %c0_i32_0 = arith.constant 0 : i32
    return %c0_i32, %arg0 : i32, i32
  }
  func.func @transform_8(%arg0: i32) -> (i32, i32) {
    %c0_i32 = arith.constant 0 : i32
    %c0_i32_0 = arith.constant 0 : i32
    return %c0_i32, %arg0 : i32, i32
  }
}

module attributes {stable_mosaic.version = 11 : i64} {
  func.func @_final_layer_kernel(%arg0: i32, %arg1: memref<1xf32, #tpu.memory_space<smem>>, %arg2: memref<32x512xf32, #tpu.memory_space<vmem>>, %arg3: memref<32x512xbf16, #tpu.memory_space<vmem>>, %arg4: memref<1x32xbf16, #tpu.memory_space<vmem>>, %arg5: memref<1x512xf32, #tpu.memory_space<vmem>>, %arg6: memref<1x512xf32, #tpu.memory_space<vmem>>) attributes {dimension_semantics = [#tpu.dimension_semantics<parallel>], iteration_bounds = array<i64: 1>, scalar_prefetch = 0 : i64, scratch_operands = 0 : i64, tpu.core_type = #tpu.core_type<tc>, window_params = [{transform_indices = @transform_0, window_bounds = array<i64: 1>}, {transform_indices = @transform_1, window_bounds = array<i64: 32, 512>}, {transform_indices = @transform_2, window_bounds = array<i64: 32, 512>}, {pipeline_mode = #tpu.pipeline_mode<synchronous>, transform_indices = @transform_3, window_bounds = array<i64: 1, 32>}, {transform_indices = @transform_4, window_bounds = array<i64: 1, 512>}, {transform_indices = @transform_5, window_bounds = array<i64: 1, 512>}]} {
    %c0 = arith.constant 0 : index
    %0 = memref.load %arg1[%c0] : memref<1xf32, #tpu.memory_space<smem>>
    %c0_0 = arith.constant 0 : index
    %c0_1 = arith.constant 0 : index
    %1 = vector.load %arg2[%c0_0, %c0_1] : memref<32x512xf32, #tpu.memory_space<vmem>>, vector<32x512xf32>
    %c0_2 = arith.constant 0 : index
    %c0_3 = arith.constant 0 : index
    %2 = vector.load %arg5[%c0_2, %c0_3] : memref<1x512xf32, #tpu.memory_space<vmem>>, vector<1x512xf32>
    %3 = vector.broadcast %2 : vector<1x512xf32> to vector<32x512xf32>
    %4 = arith.mulf %1, %3 : vector<32x512xf32>
    %cst = arith.constant 1.000000e+00 : f32
    %5 = arith.subf %cst, %0 : f32
    %6 = vector.broadcast %5 : f32 to vector<32x512xf32>
    %7 = arith.mulf %6, %4 : vector<32x512xf32>
    %c0_4 = arith.constant 0 : index
    %c0_5 = arith.constant 0 : index
    %8 = vector.load %arg3[%c0_4, %c0_5] : memref<32x512xbf16, #tpu.memory_space<vmem>>, vector<32x512xbf16>
    %9 = arith.extf %8 : vector<32x512xbf16> to vector<32x512xf32>
    %10 = vector.broadcast %0 : f32 to vector<32x512xf32>
    %11 = arith.mulf %10, %9 : vector<32x512xf32>
    %12 = arith.addf %7, %11 : vector<32x512xf32>
    %c0_6 = arith.constant 0 : index
    %c0_7 = arith.constant 0 : index
    %13 = vector.load %arg4[%c0_6, %c0_7] : memref<1x32xbf16, #tpu.memory_space<vmem>>, vector<1x32xbf16>
    %14 = arith.truncf %12 : vector<32x512xf32> to vector<32x512xbf16>
    %cst_8 = arith.constant dense<0.000000e+00> : vector<1x512xf32>
    %15 = tpu.matmul %13, %14, %cst_8 {dimension_numbers = #tpu.dot_dimension_numbers<[1], [0], [0], [1], [0, 0, 1, 1], [], []>} : vector<1x32xbf16>, vector<32x512xbf16>, vector<1x512xf32> -> vector<1x512xf32>
    %c0_9 = arith.constant 0 : index
    %c0_10 = arith.constant 0 : index
    %16 = vector.load %arg6[%c0_9, %c0_10] : memref<1x512xf32, #tpu.memory_space<vmem>>, vector<1x512xf32>
    tpu.vector_store %arg6[%c0_9, %c0_10], %15 {strides = array<i32>} : memref<1x512xf32, #tpu.memory_space<vmem>>, vector<1x512xf32>,
    return
  }
  func.func @transform_0(%arg0: i32) -> i32 {
    %c0_i32 = arith.constant 0 : i32
    %c0_i32_0 = arith.constant 0 : i32
    return %c0_i32 : i32
  }
  func.func @transform_1(%arg0: i32) -> (i32, i32) {
    %c0_i32 = arith.constant 0 : i32
    %c0_i32_0 = arith.constant 0 : i32
    return %c0_i32, %arg0 : i32, i32
  }
  func.func @transform_2(%arg0: i32) -> (i32, i32) {
    %c0_i32 = arith.constant 0 : i32
    %c0_i32_0 = arith.constant 0 : i32
    return %c0_i32, %arg0 : i32, i32
  }
  func.func @transform_3(%arg0: i32) -> (i32, i32) {
    %c0_i32 = arith.constant 0 : i32
    %c0_i32_0 = arith.constant 0 : i32
    %c0_i32_1 = arith.constant 0 : i32
    return %c0_i32, %c0_i32_0 : i32, i32
  }
  func.func @transform_4(%arg0: i32) -> (i32, i32) {
    %c0_i32 = arith.constant 0 : i32
    %c0_i32_0 = arith.constant 0 : i32
    return %c0_i32, %arg0 : i32, i32
  }
  func.func @transform_5(%arg0: i32) -> (i32, i32) {
    %c0_i32 = arith.constant 0 : i32
    %c0_i32_0 = arith.constant 0 : i32
    return %c0_i32, %arg0 : i32, i32
  }
}

</mosaic_0001>

<llo_original>
// kernel: fnn2d_forward.4
$region0: #{fnn2d_forward.4}
  #allocation0 [shape = 'u32[]', space=smem, size = 0x4, offset = 0x4, fixed_abs, tag = 'smem constant byte address 0x4 - core index']
  #allocation1 [shape = 'u32[72,128]{1,0:T(1,128)}', space=vmem, size = 0x9000, scoped, tag = 'internal scratch']
  %s0 = inlined_call_operand.vmem [shape: f32[3,512], index: 0, kind: input, shape index: {}]
  %s1 = inlined_call_operand.vmem [shape: bf16[32,3], index: 1, kind: input, shape index: {}]
  %s2 = inlined_call_operand.vmem [shape: bf16[32,32], index: 2, kind: input, shape index: {}]
  %s3 = inlined_call_operand.vmem [shape: bf16[32,32], index: 3, kind: input, shape index: {}]
  %s4 = inlined_call_operand.vmem [shape: f32[1,512], index: 4, kind: input, shape index: {}]
  %s5 = inlined_call_operand.vmem [shape: bf16[32,512], index: 5, kind: output, shape index: {0}]
  %s6 = inlined_call_operand.vmem [shape: f32[32,512], index: 6, kind: output, shape index: {1}]
  %7 = xla_tuple %s5, %s6
  %s8 = sld [smem:[#allocation0]]
  $region38: #{fnn2d_forward.4} parent=0
    _
  %s10 = ssub.s32 1, %s8
  %s11 = scalar_select 0, %s10, %s8
  // Predicated region
  $region2: #{fnn2d_forward.4} parent=0 // pred_check
    _
  $region3: #{fnn2d_forward.4} parent=0 // pred_check_branch
    %13 = sbr.rel (0) target = $region5
  $region4: #{fnn2d_forward.4} parent=0 // pred_region
    _
  $region5: #{fnn2d_forward.4} parent=0 // pred_fallthru
    _
  // Predicated region
  $region6: #{fnn2d_forward.4} parent=0 // pred_check
    _
  $region7: #{fnn2d_forward.4} parent=0 // pred_check_branch
    %15 = sbr.rel (0) target = $region9
  $region8: #{fnn2d_forward.4} parent=0 // pred_region
    _
  $region9: #{fnn2d_forward.4} parent=0 // pred_fallthru
    _
  // Predicated region
  $region10: #{fnn2d_forward.4} parent=0 // pred_check
    _
  $region11: #{fnn2d_forward.4} parent=0 // pred_check_branch
    %17 = sbr.rel (0) target = $region13
  $region12: #{fnn2d_forward.4} parent=0 // pred_region
    _
  $region13: #{fnn2d_forward.4} parent=0 // pred_fallthru
    _
  // Predicated region
  $region14: #{fnn2d_forward.4} parent=0 // pred_check
    _
  $region15: #{fnn2d_forward.4} parent=0 // pred_check_branch
    %19 = sbr.rel (0) target = $region17
  $region16: #{fnn2d_forward.4} parent=0 // pred_region
    _
  $region17: #{fnn2d_forward.4} parent=0 // pred_fallthru
    _
  // Predicated region
  $region18: #{fnn2d_forward.4} parent=0 // pred_check
    _
  $region19: #{fnn2d_forward.4} parent=0 // pred_check_branch
    %21 = sbr.rel (0) target = $region21
  $region20: #{fnn2d_forward.4} parent=0 // pred_region
    _
  $region21: #{fnn2d_forward.4} parent=0 // pred_fallthru
    _
  %v23 = vld [vmem:[%s1] sm:$0xf]
  %v24 = vld [vmem:[%s1 + $0x4] sm:$0xf]
  %v25 = vld [vmem:[%s1 + $0x8] sm:$0xf]
  %v26 = vld [vmem:[%s1 + $0xc] sm:$0xf]
  %v27 = vld [vmem:[%s0] sm:$0x77]
  %v28 = vld [vmem:[%s0 + $0x8] sm:$0x77]
  %31 = vst [vmem:[#allocation1] ss:$2 sm:$0xff] %v27
  %s32 = scalar_lea.vmem [#allocation1], 16
  %33 = vst [vmem:[%s32] ss:$2 sm:$0xff] %v28
  %v34 = vld.sshfl [vmem:[#allocation1] sm:$0xff pattern:$0x75316420]
  %v35 = vld.sshfl [vmem:[#allocation1 + $0x8] sm:$0xff pattern:$0x75316420]
  %v36 = vld.sshfl [vmem:[#allocation1 + $0x10] sm:$0xff pattern:$0x75316420]
  %v37 = vld.sshfl [vmem:[#allocation1 + $0x18] sm:$0xff pattern:$0x75316420]
  %v42 = vpack.c.bf16 %v34, %v34
  %v43 = vpack.c.bf16 %v35, %v35
  %v44 = vpack.c.bf16 %v36, %v36
  %v45 = vpack.c.bf16 %v37, %v37
  %v50 = vunpack.c.l.b16 %v23
  %v51 = vunpack.c.l.b16 %v24
  %v52 = vunpack.c.l.b16 %v25
  %v53 = vunpack.c.l.b16 %v26
  %v54 = vpack.c.b16 %v51, %v50
  %v55 = vpack.c.b16 %v53, %v52
  %vm56 = vcmask 23552
  %v58 = vsel %vm56, %v54, 0
  %v61 = vsel %vm56, %v55, 0
  %vm63 = vcmask 1040384
  %vm64 = vcmask 1041408
  %v65 = vsel %vm63, 4294967295, 65535
  %v66 = vsel %vm64, %v65, 0
  %v68 = vand.u32 %v42, %v66
  %v71 = vand.u32 %v43, %v66
  %v74 = vand.u32 %v44, %v66
  %v77 = vand.u32 %v45, %v66
  %79 = vmatpush.bf16.msra.mxu0 0
  %80 = vmatpush.bf16.msra.mxu0 0
  %81 = vmatpush.bf16.msra.mxu0 0
  %82 = vmatpush.bf16.msra.mxu0 0
  %83 = vmatpush.bf16.msra.mxu0 0
  %84 = vmatpush.bf16.msra.mxu0 0
  %85 = vmatpush.bf16.msra.mxu0 0
  %86 = vmatpush.bf16.msra.mxu0 %v68
  %87 = vmatmul.bf16.gmra.mxu0 %v58
  %v88 = vpop.f32.mrf.mxu0
  %v89 = vadd.f32 0.0, %v88
  %v90 = vpop.f32.mrf.mxu0
  %v91 = vadd.f32 0.0, %v90
  %92 = vmatmul.bf16.gmra.mxu0 %v61
  %v93 = vpop.f32.mrf.mxu0
  %v94 = vadd.f32 0.0, %v93
  %v95 = vpop.f32.mrf.mxu0
  %v96 = vadd.f32 0.0, %v95
  %97 = vdwg.mxu0
  %98 = vmatpush.bf16.msra.mxu0 0
  %99 = vmatpush.bf16.msra.mxu0 0
  %100 = vmatpush.bf16.msra.mxu0 0
  %101 = vmatpush.bf16.msra.mxu0 0
  %102 = vmatpush.bf16.msra.mxu0 0
  %103 = vmatpush.bf16.msra.mxu0 0
  %104 = vmatpush.bf16.msra.mxu0 0
  %105 = vmatpush.bf16.msra.mxu0 %v71
  %106 = vmatmul.bf16.gmra.mxu0 %v58
  %v107 = vpop.f32.mrf.mxu0
  %v108 = vadd.f32 0.0, %v107
  %v109 = vpop.f32.mrf.mxu0
  %v110 = vadd.f32 0.0, %v109
  %111 = vmatmul.bf16.gmra.mxu0 %v61
  %v112 = vpop.f32.mrf.mxu0
  %v113 = vadd.f32 0.0, %v112
  %v114 = vpop.f32.mrf.mxu0
  %v115 = vadd.f32 0.0, %v114
  %116 = vdwg.mxu0
  %117 = vmatpush.bf16.msra.mxu0 0
  %118 = vmatpush.bf16.msra.mxu0 0
  %119 = vmatpush.bf16.msra.mxu0 0
  %120 = vmatpush.bf16.msra.mxu0 0
  %121 = vmatpush.bf16.msra.mxu0 0
  %122 = vmatpush.bf16.msra.mxu0 0
  %123 = vmatpush.bf16.msra.mxu0 0
  %124 = vmatpush.bf16.msra.mxu0 %v74
  %125 = vmatmul.bf16.gmra.mxu0 %v58
  %v126 = vpop.f32.mrf.mxu0
  %v127 = vadd.f32 0.0, %v126
  %v128 = vpop.f32.mrf.mxu0
  %v129 = vadd.f32 0.0, %v128
  %130 = vmatmul.bf16.gmra.mxu0 %v61
  %v131 = vpop.f32.mrf.mxu0
  %v132 = vadd.f32 0.0, %v131
  %v133 = vpop.f32.mrf.mxu0
  %v134 = vadd.f32 0.0, %v133
  %135 = vdwg.mxu0
  %136 = vmatpush.bf16.msra.mxu0 0
  %137 = vmatpush.bf16.msra.mxu0 0
  %138 = vmatpush.bf16.msra.mxu0 0
  %139 = vmatpush.bf16.msra.mxu0 0
  %140 = vmatpush.bf16.msra.mxu0 0
  %141 = vmatpush.bf16.msra.mxu0 0
  %142 = vmatpush.bf16.msra.mxu0 0
  %143 = vmatpush.bf16.msra.mxu0 %v77
  %144 = vmatmul.bf16.gmra.mxu0 %v58
  %v145 = vpop.f32.mrf.mxu0
  %v146 = vadd.f32 0.0, %v145
  %v147 = vpop.f32.mrf.mxu0
  %v148 = vadd.f32 0.0, %v147
  %149 = vmatmul.bf16.gmra.mxu0 %v61
  %v150 = vpop.f32.mrf.mxu0
  %v151 = vadd.f32 0.0, %v150
  %v152 = vpop.f32.mrf.mxu0
  %v153 = vadd.f32 0.0, %v152
  %154 = vdwg.mxu0
  %v155 = vpack.c.bf16 %v108, %v89
  %v156 = vpack.c.bf16 %v146, %v127
  %v157 = vpack.c.bf16 %v110, %v91
  %v158 = vpack.c.bf16 %v148, %v129
  %v159 = vpack.c.bf16 %v113, %v94
  %v160 = vpack.c.bf16 %v151, %v132
  %v161 = vpack.c.bf16 %v115, %v96
  %v162 = vpack.c.bf16 %v153, %v134
  %163 = vst [vmem:[%s5] sm:$0xff] %v155
  %164 = vst [vmem:[%s5 + $0x8] sm:$0xff] %v156
  %165 = vst [vmem:[%s5 + $0x10] sm:$0xff] %v157
  %166 = vst [vmem:[%s5 + $0x18] sm:$0xff] %v158
  %167 = vst [vmem:[%s5 + $0x20] sm:$0xff] %v159
  %168 = vst [vmem:[%s5 + $0x28] sm:$0xff] %v160
  %169 = vst [vmem:[%s5 + $0x30] sm:$0xff] %v161
  %170 = vst [vmem:[%s5 + $0x38] sm:$0xff] %v162
  %v171 = vld [vmem:[%s2] sm:$0xf]
  %v172 = vld [vmem:[%s2 + $0x4] sm:$0xf]
  %v173 = vld [vmem:[%s2 + $0x8] sm:$0xf]
  %v174 = vld [vmem:[%s2 + $0xc] sm:$0xf]
  %v179 = vunpack.c.l.b16 %v171
  %v180 = vunpack.c.l.b16 %v172
  %v181 = vunpack.c.l.b16 %v173
  %v182 = vunpack.c.l.b16 %v174
  %v183 = vpack.c.b16 %v180, %v179
  %v184 = vpack.c.b16 %v182, %v181
  %v193 = vunpack.c.l.b16 %v155
  %v194 = vunpack.c.h.b16 %v155
  %v195 = vunpack.c.l.b16 %v156
  %v196 = vunpack.c.h.b16 %v156
  %v197 = vunpack.c.l.b16 %v157
  %v198 = vunpack.c.h.b16 %v157
  %v199 = vunpack.c.l.b16 %v158
  %v200 = vunpack.c.h.b16 %v158
  %v201 = vunpack.c.l.b16 %v159
  %v202 = vunpack.c.h.b16 %v159
  %v203 = vunpack.c.l.b16 %v160
  %v204 = vunpack.c.h.b16 %v160
  %v205 = vunpack.c.l.b16 %v161
  %v206 = vunpack.c.h.b16 %v161
  %v207 = vunpack.c.l.b16 %v162
  %v208 = vunpack.c.h.b16 %v162
  %v209 = vpack.c.b16 %v197, %v193
  %v210 = vpack.c.b16 %v198, %v194
  %v211 = vpack.c.b16 %v199, %v195
  %v212 = vpack.c.b16 %v200, %v196
  %v213 = vpack.c.b16 %v205, %v201
  %v214 = vpack.c.b16 %v206, %v202
  %v215 = vpack.c.b16 %v207, %v203
  %v216 = vpack.c.b16 %v208, %v204
  %vm225 = vcmask 261120
  %v227 = vsel %vm225, %v183, 0
  %v230 = vsel %vm225, %v184, 0
  %232 = vmatpush.bf16.msra.mxu0 0
  %233 = vmatpush.bf16.msra.mxu0 0
  %234 = vmatpush.bf16.msra.mxu0 0
  %235 = vmatpush.bf16.msra.mxu0 0
  %236 = vmatpush.bf16.msra.mxu0 0
  %237 = vmatpush.bf16.msra.mxu0 0
  %238 = vmatpush.bf16.msra.mxu0 %v213
  %239 = vmatpush.bf16.msra.mxu0 %v209
  %240 = vmatmul.bf16.gmra.mxu0 %v227
  %v241 = vpop.f32.mrf.mxu0
  %v242 = vadd.f32 0.0, %v241
  %v243 = vpop.f32.mrf.mxu0
  %v244 = vadd.f32 0.0, %v243
  %245 = vmatmul.bf16.gmra.mxu0 %v230
  %v246 = vpop.f32.mrf.mxu0
  %v247 = vadd.f32 0.0, %v246
  %v248 = vpop.f32.mrf.mxu0
  %v249 = vadd.f32 0.0, %v248
  %250 = vdwg.mxu0
  %251 = vmatpush.bf16.msra.mxu0 0
  %252 = vmatpush.bf16.msra.mxu0 0
  %253 = vmatpush.bf16.msra.mxu0 0
  %254 = vmatpush.bf16.msra.mxu0 0
  %255 = vmatpush.bf16.msra.mxu0 0
  %256 = vmatpush.bf16.msra.mxu0 0
  %257 = vmatpush.bf16.msra.mxu0 %v214
  %258 = vmatpush.bf16.msra.mxu0 %v210
  %259 = vmatmul.bf16.gmra.mxu0 %v227
  %v260 = vpop.f32.mrf.mxu0
  %v261 = vadd.f32 0.0, %v260
  %v262 = vpop.f32.mrf.mxu0
  %v263 = vadd.f32 0.0, %v262
  %264 = vmatmul.bf16.gmra.mxu0 %v230
  %v265 = vpop.f32.mrf.mxu0
  %v266 = vadd.f32 0.0, %v265
  %v267 = vpop.f32.mrf.mxu0
  %v268 = vadd.f32 0.0, %v267
  %269 = vdwg.mxu0
  %270 = vmatpush.bf16.msra.mxu0 0
  %271 = vmatpush.bf16.msra.mxu0 0
  %272 = vmatpush.bf16.msra.mxu0 0
  %273 = vmatpush.bf16.msra.mxu0 0
  %274 = vmatpush.bf16.msra.mxu0 0
  %275 = vmatpush.bf16.msra.mxu0 0
  %276 = vmatpush.bf16.msra.mxu0 %v215
  %277 = vmatpush.bf16.msra.mxu0 %v211
  %278 = vmatmul.bf16.gmra.mxu0 %v227
  %v279 = vpop.f32.mrf.mxu0
  %v280 = vadd.f32 0.0, %v279
  %v281 = vpop.f32.mrf.mxu0
  %v282 = vadd.f32 0.0, %v281
  %283 = vmatmul.bf16.gmra.mxu0 %v230
  %v284 = vpop.f32.mrf.mxu0
  %v285 = vadd.f32 0.0, %v284
  %v286 = vpop.f32.mrf.mxu0
  %v287 = vadd.f32 0.0, %v286
  %288 = vdwg.mxu0
  %289 = vmatpush.bf16.msra.mxu0 0
  %290 = vmatpush.bf16.msra.mxu0 0
  %291 = vmatpush.bf16.msra.mxu0 0
  %292 = vmatpush.bf16.msra.mxu0 0
  %293 = vmatpush.bf16.msra.mxu0 0
  %294 = vmatpush.bf16.msra.mxu0 0
  %295 = vmatpush.bf16.msra.mxu0 %v216
  %296 = vmatpush.bf16.msra.mxu0 %v212
  %297 = vmatmul.bf16.gmra.mxu0 %v227
  %v298 = vpop.f32.mrf.mxu0
  %v299 = vadd.f32 0.0, %v298
  %v300 = vpop.f32.mrf.mxu0
  %v301 = vadd.f32 0.0, %v300
  %302 = vmatmul.bf16.gmra.mxu0 %v230
  %v303 = vpop.f32.mrf.mxu0
  %v304 = vadd.f32 0.0, %v303
  %v305 = vpop.f32.mrf.mxu0
  %v306 = vadd.f32 0.0, %v305
  %307 = vdwg.mxu0
  %v308 = vtanh.pop %v242
  %v309 = vtanh.pop %v261
  %v310 = vtanh.pop %v280
  %v311 = vtanh.pop %v299
  %v312 = vtanh.pop %v244
  %v313 = vtanh.pop %v263
  %v314 = vtanh.pop %v282
  %v315 = vtanh.pop %v301
  %v316 = vtanh.pop %v247
  %v317 = vtanh.pop %v266
  %v318 = vtanh.pop %v285
  %v319 = vtanh.pop %v304
  %v320 = vtanh.pop %v249
  %v321 = vtanh.pop %v268
  %v322 = vtanh.pop %v287
  %v323 = vtanh.pop %v306
  %v324 = vld [vmem:[%s3] sm:$0xf]
  %v325 = vld [vmem:[%s3 + $0x4] sm:$0xf]
  %v326 = vld [vmem:[%s3 + $0x8] sm:$0xf]
  %v327 = vld [vmem:[%s3 + $0xc] sm:$0xf]
  %v328 = vpack.c.bf16 %v312, %v308
  %v329 = vpack.c.bf16 %v313, %v309
  %v330 = vpack.c.bf16 %v314, %v310
  %v331 = vpack.c.bf16 %v315, %v311
  %v332 = vpack.c.bf16 %v320, %v316
  %v333 = vpack.c.bf16 %v321, %v317
  %v334 = vpack.c.bf16 %v322, %v318
  %v335 = vpack.c.bf16 %v323, %v319
  %v340 = vunpack.c.l.b16 %v324
  %v341 = vunpack.c.l.b16 %v325
  %v342 = vunpack.c.l.b16 %v326
  %v343 = vunpack.c.l.b16 %v327
  %v344 = vpack.c.b16 %v341, %v340
  %v345 = vpack.c.b16 %v343, %v342
  %v347 = vsel %vm225, %v344, 0
  %v350 = vsel %vm225, %v345, 0
  %352 = vmatpush.bf16.msra.mxu0 0
  %353 = vmatpush.bf16.msra.mxu0 0
  %354 = vmatpush.bf16.msra.mxu0 0
  %355 = vmatpush.bf16.msra.mxu0 0
  %356 = vmatpush.bf16.msra.mxu0 0
  %357 = vmatpush.bf16.msra.mxu0 0
  %358 = vmatpush.bf16.msra.mxu0 %v332
  %359 = vmatpush.bf16.msra.mxu0 %v328
  %360 = vmatmul.bf16.gmra.mxu0 %v347
  %v361 = vpop.f32.mrf.mxu0
  %v362 = vadd.f32 0.0, %v361
  %v363 = vpop.f32.mrf.mxu0
  %v364 = vadd.f32 0.0, %v363
  %365 = vmatmul.bf16.gmra.mxu0 %v350
  %v366 = vpop.f32.mrf.mxu0
  %v367 = vadd.f32 0.0, %v366
  %v368 = vpop.f32.mrf.mxu0
  %v369 = vadd.f32 0.0, %v368
  %370 = vdwg.mxu0
  %371 = vmatpush.bf16.msra.mxu0 0
  %372 = vmatpush.bf16.msra.mxu0 0
  %373 = vmatpush.bf16.msra.mxu0 0
  %374 = vmatpush.bf16.msra.mxu0 0
  %375 = vmatpush.bf16.msra.mxu0 0
  %376 = vmatpush.bf16.msra.mxu0 0
  %377 = vmatpush.bf16.msra.mxu0 %v333
  %378 = vmatpush.bf16.msra.mxu0 %v329
  %379 = vmatmul.bf16.gmra.mxu0 %v347
  %v380 = vpop.f32.mrf.mxu0
  %v381 = vadd.f32 0.0, %v380
  %v382 = vpop.f32.mrf.mxu0
  %v383 = vadd.f32 0.0, %v382
  %384 = vmatmul.bf16.gmra.mxu0 %v350
  %v385 = vpop.f32.mrf.mxu0
  %v386 = vadd.f32 0.0, %v385
  %v387 = vpop.f32.mrf.mxu0
  %v388 = vadd.f32 0.0, %v387
  %389 = vdwg.mxu0
  %390 = vmatpush.bf16.msra.mxu0 0
  %391 = vmatpush.bf16.msra.mxu0 0
  %392 = vmatpush.bf16.msra.mxu0 0
  %393 = vmatpush.bf16.msra.mxu0 0
  %394 = vmatpush.bf16.msra.mxu0 0
  %395 = vmatpush.bf16.msra.mxu0 0
  %396 = vmatpush.bf16.msra.mxu0 %v334
  %397 = vmatpush.bf16.msra.mxu0 %v330
  %398 = vmatmul.bf16.gmra.mxu0 %v347
  %v399 = vpop.f32.mrf.mxu0
  %v400 = vadd.f32 0.0, %v399
  %v401 = vpop.f32.mrf.mxu0
  %v402 = vadd.f32 0.0, %v401
  %403 = vmatmul.bf16.gmra.mxu0 %v350
  %v404 = vpop.f32.mrf.mxu0
  %v405 = vadd.f32 0.0, %v404
  %v406 = vpop.f32.mrf.mxu0
  %v407 = vadd.f32 0.0, %v406
  %408 = vdwg.mxu0
  %409 = vmatpush.bf16.msra.mxu0 0
  %410 = vmatpush.bf16.msra.mxu0 0
  %411 = vmatpush.bf16.msra.mxu0 0
  %412 = vmatpush.bf16.msra.mxu0 0
  %413 = vmatpush.bf16.msra.mxu0 0
  %414 = vmatpush.bf16.msra.mxu0 0
  %415 = vmatpush.bf16.msra.mxu0 %v335
  %416 = vmatpush.bf16.msra.mxu0 %v331
  %417 = vmatmul.bf16.gmra.mxu0 %v347
  %v418 = vpop.f32.mrf.mxu0
  %v419 = vadd.f32 0.0, %v418
  %v420 = vpop.f32.mrf.mxu0
  %v421 = vadd.f32 0.0, %v420
  %422 = vmatmul.bf16.gmra.mxu0 %v350
  %v423 = vpop.f32.mrf.mxu0
  %v424 = vadd.f32 0.0, %v423
  %v425 = vpop.f32.mrf.mxu0
  %v426 = vadd.f32 0.0, %v425
  %427 = vdwg.mxu0
  %v428 = vld [vmem:[%s4] sm:$0xf]
  %v430 = vperm.slane %v428, 0
  %v431 = vperm.slane %v428, 1
  %v432 = vperm.slane %v428, 2
  %v433 = vperm.slane %v428, 3
  %v438 = vmul.f32 %v362, %v430
  %v439 = vmul.f32 %v381, %v431
  %v440 = vmul.f32 %v400, %v432
  %v441 = vmul.f32 %v419, %v433
  %v442 = vmul.f32 %v364, %v430
  %v443 = vmul.f32 %v383, %v431
  %v444 = vmul.f32 %v402, %v432
  %v445 = vmul.f32 %v421, %v433
  %v446 = vmul.f32 %v367, %v430
  %v447 = vmul.f32 %v386, %v431
  %v448 = vmul.f32 %v405, %v432
  %v449 = vmul.f32 %v424, %v433
  %v450 = vmul.f32 %v369, %v430
  %v451 = vmul.f32 %v388, %v431
  %v452 = vmul.f32 %v407, %v432
  %v453 = vmul.f32 %v426, %v433
  %454 = vst [vmem:[%s6] sm:$0xff] %v438
  %455 = vst [vmem:[%s6 + $0x8] sm:$0xff] %v439
  %456 = vst [vmem:[%s6 + $0x10] sm:$0xff] %v440
  %457 = vst [vmem:[%s6 + $0x18] sm:$0xff] %v441
  %458 = vst [vmem:[%s6 + $0x20] sm:$0xff] %v442
  %459 = vst [vmem:[%s6 + $0x28] sm:$0xff] %v443
  %460 = vst [vmem:[%s6 + $0x30] sm:$0xff] %v444
  %461 = vst [vmem:[%s6 + $0x38] sm:$0xff] %v445
  %462 = vst [vmem:[%s6 + $0x40] sm:$0xff] %v446
  %463 = vst [vmem:[%s6 + $0x48] sm:$0xff] %v447
  %464 = vst [vmem:[%s6 + $0x50] sm:$0xff] %v448
  %465 = vst [vmem:[%s6 + $0x58] sm:$0xff] %v449
  %466 = vst [vmem:[%s6 + $0x60] sm:$0xff] %v450
  %467 = vst [vmem:[%s6 + $0x68] sm:$0xff] %v451
  %468 = vst [vmem:[%s6 + $0x70] sm:$0xff] %v452
  %469 = vst [vmem:[%s6 + $0x78] sm:$0xff] %v453
  // Predicated region
  $region22: #{fnn2d_forward.4} parent=0 // pred_check
    _
  $region23: #{fnn2d_forward.4} parent=0 // pred_check_branch
    %471 = sbr.rel (0) target = $region25
  $region24: #{fnn2d_forward.4} parent=0 // pred_region
    _
  $region25: #{fnn2d_forward.4} parent=0 // pred_fallthru
    _
  // Predicated region
  $region26: #{fnn2d_forward.4} parent=0 // pred_check
    _
  $region27: #{fnn2d_forward.4} parent=0 // pred_check_branch
    %473 = sbr.rel (0) target = $region29
  $region28: #{fnn2d_forward.4} parent=0 // pred_region
    _
  $region29: #{fnn2d_forward.4} parent=0 // pred_fallthru
    _
  // Predicated region
  $region30: #{fnn2d_forward.4} parent=0 // pred_check
    _
  $region31: #{fnn2d_forward.4} parent=0 // pred_check_branch
    %475 = sbr.rel (0) target = $region33
  $region32: #{fnn2d_forward.4} parent=0 // pred_region
    _
  $region33: #{fnn2d_forward.4} parent=0 // pred_fallthru
    _
  // Predicated region
  $region34: #{fnn2d_forward.4} parent=0 // pred_check
    _
  $region35: #{fnn2d_forward.4} parent=0 // pred_check_branch
    %477 = sbr.rel (0) target = $region37
  $region36: #{fnn2d_forward.4} parent=0 // pred_region
    _
  $region37: #{fnn2d_forward.4} parent=0 // pred_fallthru
    _

// kernel: custom-call.4
$region0: #{custom-call.4}
  %s0 = inlined_call_operand.hbm [shape: c64[2,32,32,4,4], index: 0, kind: input, shape index: {}]
  %s1 = inlined_call_operand.vmem [shape: f32[2,32,32,4,4], index: 1, kind: output, shape index: {}]
  $region1: #{custom-call.4} parent=0
    #allocation0 [shape = 's32[1]{0}', space=sflag, size = 0x4, scoped, tag = 'scoped memory for custom-call.4']
    %2 = vsyncpa [#allocation0], 0
    %s4 = sshll.u32 %s0, 4
    %s5 = int_to_ptr.hbm [resolvable:$true] %s4
    %s6 = sshll.u32 %s1, 4
    %s7 = int_to_ptr.vmem [resolvable:$true] %s6
    %9 = dma.hbm_to_vmem [thread:$0]  %s5, 16384, %s7, [#allocation0]
    %11 = dma.done [#allocation0], 16384
    %12 = vsyncpa [#allocation0], 1

// kernel: custom-call.5
$region0: #{custom-call.5}
  %s0 = inlined_call_operand.hbm [shape: c64[2,32,32,4,4], index: 0, kind: input, shape index: {}]
  %s1 = inlined_call_operand.vmem [shape: f32[2,32,32,4,4], index: 1, kind: output, shape index: {}]
  %s2 = scalar_lea.hbm %s0, 1024
  $region1: #{custom-call.5} parent=0
    #allocation0 [shape = 's32[1]{0}', space=sflag, size = 0x4, scoped, tag = 'scoped memory for custom-call.5']
    %3 = vsyncpa [#allocation0], 0
    %s5 = sshll.u32 %s2, 4
    %s6 = int_to_ptr.hbm [resolvable:$true] %s5
    %s7 = sshll.u32 %s1, 4
    %s8 = int_to_ptr.vmem [resolvable:$true] %s7
    %10 = dma.hbm_to_vmem [thread:$0]  %s6, 16384, %s8, [#allocation0]
    %12 = dma.done [#allocation0], 16384
    %13 = vsyncpa [#allocation0], 1

// kernel: reverse.6
$region0: #{reverse.6}
  #allocation0 [shape = 's32[1]{0}', space=sflag, size = 0x4, scoped, tag = 'scoped memory for reverse.6']
  %s0 = inlined_call_operand.vmem [shape: f32[32,2,16,7], index: 0, kind: input, shape index: {}]
  %s1 = inlined_call_operand.vmem [shape: f32[32,2,16,7], index: 1, kind: output, shape index: {}]
  %s2 = scalar_lea.vmem %s0, 96
  %v3 = vld [vmem:[%s2] sm:$0xff]
  %4 = vst [vmem:[%s1] sm:$0xff] %v3
  %s5 = scalar_lea.vmem %s0, 208
  %v6 = vld [vmem:[%s5] sm:$0xff]
  %s7 = scalar_lea.vmem %s1, 112
  %8 = vst [vmem:[%s7] sm:$0xff] %v6
  %s9 = scalar_lea.vmem %s0, 80
  %v10 = vld [vmem:[%s9] sm:$0xff]
  %s11 = scalar_lea.vmem %s1, 16
  %12 = vst [vmem:[%s11] sm:$0xff] %v10
  %s13 = scalar_lea.vmem %s0, 192
  %v14 = vld [vmem:[%s13] sm:$0xff]
  %s15 = scalar_lea.vmem %s1, 128
  %16 = vst [vmem:[%s15] sm:$0xff] %v14
  %s17 = scalar_lea.vmem %s0, 64
  %v18 = vld [vmem:[%s17] sm:$0xff]
  %s19 = scalar_lea.vmem %s1, 32
  %20 = vst [vmem:[%s19] sm:$0xff] %v18
  %s21 = scalar_lea.vmem %s0, 176
  %v22 = vld [vmem:[%s21] sm:$0xff]
  %s23 = scalar_lea.vmem %s1, 144
  %24 = vst [vmem:[%s23] sm:$0xff] %v22
  %s25 = scalar_lea.vmem %s0, 48
  %v26 = vld [vmem:[%s25] sm:$0xff]
  %s27 = scalar_lea.vmem %s1, 48
  %28 = vst [vmem:[%s27] sm:$0xff] %v26
  %s29 = scalar_lea.vmem %s0, 160
  %v30 = vld [vmem:[%s29] sm:$0xff]
  %s31 = scalar_lea.vmem %s1, 160
  %32 = vst [vmem:[%s31] sm:$0xff] %v30
  %s33 = scalar_lea.vmem %s0, 32
  %v34 = vld [vmem:[%s33] sm:$0xff]
  %s35 = scalar_lea.vmem %s1, 64
  %36 = vst [vmem:[%s35] sm:$0xff] %v34
  %s37 = scalar_lea.vmem %s0, 144
  %v38 = vld [vmem:[%s37] sm:$0xff]
  %s39 = scalar_lea.vmem %s1, 176
  %40 = vst [vmem:[%s39] sm:$0xff] %v38
  %s41 = scalar_lea.vmem %s0, 16
  %v42 = vld [vmem:[%s41] sm:$0xff]
  %s43 = scalar_lea.vmem %s1, 80
  %44 = vst [vmem:[%s43] sm:$0xff] %v42
  %s45 = scalar_lea.vmem %s0, 128
  %v46 = vld [vmem:[%s45] sm:$0xff]
  %s47 = scalar_lea.vmem %s1, 192
  %48 = vst [vmem:[%s47] sm:$0xff] %v46
  %v49 = vld [vmem:[%s0] sm:$0xff]
  %s50 = scalar_lea.vmem %s1, 96
  %51 = vst [vmem:[%s50] sm:$0xff] %v49
  %s52 = scalar_lea.vmem %s0, 112
  %v53 = vld [vmem:[%s52] sm:$0xff]
  %s54 = scalar_lea.vmem %s1, 208
  %55 = vst [vmem:[%s54] sm:$0xff] %v53
  %s56 = scalar_lea.vmem %s0, 104
  %v57 = vld [vmem:[%s56] sm:$0xff]
  %s58 = scalar_lea.vmem %s1, 8
  %59 = vst [vmem:[%s58] sm:$0xff] %v57
  %s60 = scalar_lea.vmem %s0, 216
  %v61 = vld [vmem:[%s60] sm:$0xff]
  %s62 = scalar_lea.vmem %s1, 120
  %63 = vst [vmem:[%s62] sm:$0xff] %v61
  %s64 = scalar_lea.vmem %s0, 88
  %v65 = vld [vmem:[%s64] sm:$0xff]
  %s66 = scalar_lea.vmem %s1, 24
  %67 = vst [vmem:[%s66] sm:$0xff] %v65
  %s68 = scalar_lea.vmem %s0, 200
  %v69 = vld [vmem:[%s68] sm:$0xff]
  %s70 = scalar_lea.vmem %s1, 136
  %71 = vst [vmem:[%s70] sm:$0xff] %v69
  %s72 = scalar_lea.vmem %s0, 72
  %v73 = vld [vmem:[%s72] sm:$0xff]
  %s74 = scalar_lea.vmem %s1, 40
  %75 = vst [vmem:[%s74] sm:$0xff] %v73
  %s76 = scalar_lea.vmem %s0, 184
  %v77 = vld [vmem:[%s76] sm:$0xff]
  %s78 = scalar_lea.vmem %s1, 152
  %79 = vst [vmem:[%s78] sm:$0xff] %v77
  %s80 = scalar_lea.vmem %s0, 56
  %v81 = vld [vmem:[%s80] sm:$0xff]
  %s82 = scalar_lea.vmem %s1, 56
  %83 = vst [vmem:[%s82] sm:$0xff] %v81
  %s84 = scalar_lea.vmem %s0, 168
  %v85 = vld [vmem:[%s84] sm:$0xff]
  %s86 = scalar_lea.vmem %s1, 168
  %87 = vst [vmem:[%s86] sm:$0xff] %v85
  %s88 = scalar_lea.vmem %s0, 40
  %v89 = vld [vmem:[%s88] sm:$0xff]
  %s90 = scalar_lea.vmem %s1, 72
  %91 = vst [vmem:[%s90] sm:$0xff] %v89
  %s92 = scalar_lea.vmem %s0, 152
  %v93 = vld [vmem:[%s92] sm:$0xff]
  %s94 = scalar_lea.vmem %s1, 184
  %95 = vst [vmem:[%s94] sm:$0xff] %v93
  %s96 = scalar_lea.vmem %s0, 24
  %v97 = vld [vmem:[%s96] sm:$0xff]
  %s98 = scalar_lea.vmem %s1, 88
  %99 = vst [vmem:[%s98] sm:$0xff] %v97
  %s100 = scalar_lea.vmem %s0, 136
  %v101 = vld [vmem:[%s100] sm:$0xff]
  %s102 = scalar_lea.vmem %s1, 200
  %103 = vst [vmem:[%s102] sm:$0xff] %v101
  %s104 = scalar_lea.vmem %s0, 8
  %v105 = vld [vmem:[%s104] sm:$0xff]
  %s106 = scalar_lea.vmem %s1, 104
  %107 = vst [vmem:[%s106] sm:$0xff] %v105
  %s108 = scalar_lea.vmem %s0, 120
  %v109 = vld [vmem:[%s108] sm:$0xff]
  %s110 = scalar_lea.vmem %s1, 216
  %111 = vst [vmem:[%s110] sm:$0xff] %v109

// kernel: fnn2d_forward.5
$region0: #{fnn2d_forward.5}
  #allocation0 [shape = 'u32[]', space=smem, size = 0x4, offset = 0x4, fixed_abs, tag = 'smem constant byte address 0x4 - core index']
  #allocation1 [shape = 'u32[72,128]{1,0:T(1,128)}', space=vmem, size = 0x9000, scoped, tag = 'internal scratch']
  #allocation2 [shape = 'f32[1]{0:T(128)S(6)}', space=smem, size = 0x200, scoped, tag = 'scoped memory for fnn2d_forward.5']
  %s0 = inlined_call_operand.<no memory space> [shape: f32[1], index: 0, kind: input, shape index: {}]
  %s1 = inlined_call_operand.vmem [shape: f32[32,512], index: 1, kind: input, shape index: {}]
  %s2 = inlined_call_operand.vmem [shape: bf16[32,512], index: 2, kind: input, shape index: {}]
  %s3 = inlined_call_operand.vmem [shape: bf16[32,32], index: 3, kind: input, shape index: {}]
  %s4 = inlined_call_operand.vmem [shape: bf16[32,32], index: 4, kind: input, shape index: {}]
  %s5 = inlined_call_operand.vmem [shape: f32[1,512], index: 5, kind: input, shape index: {}]
  %s6 = inlined_call_operand.vmem [shape: f32[1,512], index: 6, kind: input, shape index: {}]
  %s7 = inlined_call_operand.vmem [shape: bf16[32,512], index: 7, kind: output, shape index: {0}]
  %s8 = inlined_call_operand.vmem [shape: f32[32,512], index: 8, kind: output, shape index: {1}]
  %9 = xla_tuple %s7, %s8
  %s10 = sld [smem:[#allocation0]]
  $region46: #{fnn2d_forward.5} parent=0
    _
  %s12 = ssub.s32 1, %s10
  %s13 = scalar_select 0, %s12, %s10
  %14 = sst [smem:[#allocation2]] %s0
  // Predicated region
  $region2: #{fnn2d_forward.5} parent=0 // pred_check
    _
  $region3: #{fnn2d_forward.5} parent=0 // pred_check_branch
    %16 = sbr.rel (0) target = $region5
  $region4: #{fnn2d_forward.5} parent=0 // pred_region
    _
  $region5: #{fnn2d_forward.5} parent=0 // pred_fallthru
    _
  // Predicated region
  $region6: #{fnn2d_forward.5} parent=0 // pred_check
    _
  $region7: #{fnn2d_forward.5} parent=0 // pred_check_branch
    %18 = sbr.rel (0) target = $region9
  $region8: #{fnn2d_forward.5} parent=0 // pred_region
    _
  $region9: #{fnn2d_forward.5} parent=0 // pred_fallthru
    _
  // Predicated region
  $region10: #{fnn2d_forward.5} parent=0 // pred_check
    _
  $region11: #{fnn2d_forward.5} parent=0 // pred_check_branch
    %20 = sbr.rel (0) target = $region13
  $region12: #{fnn2d_forward.5} parent=0 // pred_region
    _
  $region13: #{fnn2d_forward.5} parent=0 // pred_fallthru
    _
  // Predicated region
  $region14: #{fnn2d_forward.5} parent=0 // pred_check
    _
  $region15: #{fnn2d_forward.5} parent=0 // pred_check_branch
    %22 = sbr.rel (0) target = $region17
  $region16: #{fnn2d_forward.5} parent=0 // pred_region
    _
  $region17: #{fnn2d_forward.5} parent=0 // pred_fallthru
    _
  // Predicated region
  $region18: #{fnn2d_forward.5} parent=0 // pred_check
    _
  $region19: #{fnn2d_forward.5} parent=0 // pred_check_branch
    %24 = sbr.rel (0) target = $region21
  $region20: #{fnn2d_forward.5} parent=0 // pred_region
    _
  $region21: #{fnn2d_forward.5} parent=0 // pred_fallthru
    _
  // Predicated region
  $region22: #{fnn2d_forward.5} parent=0 // pred_check
    _
  $region23: #{fnn2d_forward.5} parent=0 // pred_check_branch
    %26 = sbr.rel (0) target = $region25
  $region24: #{fnn2d_forward.5} parent=0 // pred_region
    _
  $region25: #{fnn2d_forward.5} parent=0 // pred_fallthru
    _
  // Predicated region
  $region26: #{fnn2d_forward.5} parent=0 // pred_check
    _
  $region27: #{fnn2d_forward.5} parent=0 // pred_check_branch
    %28 = sbr.rel (0) target = $region29
  $region28: #{fnn2d_forward.5} parent=0 // pred_region
    _
  $region29: #{fnn2d_forward.5} parent=0 // pred_fallthru
    _
  %s30 = sld [smem:[#allocation2]]
  %v31 = vld [vmem:[%s1] sm:$0xff]
  %v32 = vld [vmem:[%s1 + $0x8] sm:$0xff]
  %v33 = vld [vmem:[%s1 + $0x10] sm:$0xff]
  %v34 = vld [vmem:[%s1 + $0x18] sm:$0xff]
  %v35 = vld [vmem:[%s1 + $0x20] sm:$0xff]
  %v36 = vld [vmem:[%s1 + $0x28] sm:$0xff]
  %v37 = vld [vmem:[%s1 + $0x30] sm:$0xff]
  %v38 = vld [vmem:[%s1 + $0x38] sm:$0xff]
  %v39 = vld [vmem:[%s1 + $0x40] sm:$0xff]
  %v40 = vld [vmem:[%s1 + $0x48] sm:$0xff]
  %v41 = vld [vmem:[%s1 + $0x50] sm:$0xff]
  %v42 = vld [vmem:[%s1 + $0x58] sm:$0xff]
  %v43 = vld [vmem:[%s1 + $0x60] sm:$0xff]
  %v44 = vld [vmem:[%s1 + $0x68] sm:$0xff]
  %v45 = vld [vmem:[%s1 + $0x70] sm:$0xff]
  %v46 = vld [vmem:[%s1 + $0x78] sm:$0xff]
  %v47 = vld [vmem:[%s6] sm:$0xf]
  %v49 = vperm.slane %v47, 0
  %v50 = vperm.slane %v47, 1
  %v51 = vperm.slane %v47, 2
  %v52 = vperm.slane %v47, 3
  %v57 = vmul.f32 %v31, %v49
  %v58 = vmul.f32 %v32, %v50
  %v59 = vmul.f32 %v33, %v51
  %v60 = vmul.f32 %v34, %v52
  %v61 = vmul.f32 %v35, %v49
  %v62 = vmul.f32 %v36, %v50
  %v63 = vmul.f32 %v37, %v51
  %v64 = vmul.f32 %v38, %v52
  %v65 = vmul.f32 %v39, %v49
  %v66 = vmul.f32 %v40, %v50
  %v67 = vmul.f32 %v41, %v51
  %v68 = vmul.f32 %v42, %v52
  %v69 = vmul.f32 %v43, %v49
  %v70 = vmul.f32 %v44, %v50
  %v71 = vmul.f32 %v45, %v51
  %v72 = vmul.f32 %v46, %v52
  %s73 = ssub.f32 1.0, %s30
  %v74 = vstv %s73
  %v75 = vmul.f32 %v74, %v57
  %v76 = vmul.f32 %v74, %v58
  %v77 = vmul.f32 %v74, %v59
  %v78 = vmul.f32 %v74, %v60
  %v79 = vmul.f32 %v74, %v61
  %v80 = vmul.f32 %v74, %v62
  %v81 = vmul.f32 %v74, %v63
  %v82 = vmul.f32 %v74, %v64
  %v83 = vmul.f32 %v74, %v65
  %v84 = vmul.f32 %v74, %v66
  %v85 = vmul.f32 %v74, %v67
  %v86 = vmul.f32 %v74, %v68
  %v87 = vmul.f32 %v74, %v69
  %v88 = vmul.f32 %v74, %v70
  %v89 = vmul.f32 %v74, %v71
  %v90 = vmul.f32 %v74, %v72
  %v91 = vld [vmem:[%s2] sm:$0xff]
  %v92 = vld [vmem:[%s2 + $0x8] sm:$0xff]
  %v93 = vld [vmem:[%s2 + $0x10] sm:$0xff]
  %v94 = vld [vmem:[%s2 + $0x18] sm:$0xff]
  %v95 = vld [vmem:[%s2 + $0x20] sm:$0xff]
  %v96 = vld [vmem:[%s2 + $0x28] sm:$0xff]
  %v97 = vld [vmem:[%s2 + $0x30] sm:$0xff]
  %v98 = vld [vmem:[%s2 + $0x38] sm:$0xff]
  %v99 = vunpack.c.l.bf16 %v91
  %v100 = vunpack.c.h.bf16 %v91
  %v101 = vunpack.c.l.bf16 %v92
  %v102 = vunpack.c.h.bf16 %v92
  %v103 = vunpack.c.l.bf16 %v93
  %v104 = vunpack.c.h.bf16 %v93
  %v105 = vunpack.c.l.bf16 %v94
  %v106 = vunpack.c.h.bf16 %v94
  %v107 = vunpack.c.l.bf16 %v95
  %v108 = vunpack.c.h.bf16 %v95
  %v109 = vunpack.c.l.bf16 %v96
  %v110 = vunpack.c.h.bf16 %v96
  %v111 = vunpack.c.l.bf16 %v97
  %v112 = vunpack.c.h.bf16 %v97
  %v113 = vunpack.c.l.bf16 %v98
  %v114 = vunpack.c.h.bf16 %v98
  %v115 = vstv %s30
  %v116 = vmul.f32 %v115, %v99
  %v117 = vmul.f32 %v115, %v100
  %v118 = vmul.f32 %v115, %v101
  %v119 = vmul.f32 %v115, %v102
  %v120 = vmul.f32 %v115, %v103
  %v121 = vmul.f32 %v115, %v104
  %v122 = vmul.f32 %v115, %v105
  %v123 = vmul.f32 %v115, %v106
  %v124 = vmul.f32 %v115, %v107
  %v125 = vmul.f32 %v115, %v108
  %v126 = vmul.f32 %v115, %v109
  %v127 = vmul.f32 %v115, %v110
  %v128 = vmul.f32 %v115, %v111
  %v129 = vmul.f32 %v115, %v112
  %v130 = vmul.f32 %v115, %v113
  %v131 = vmul.f32 %v115, %v114
  %v132 = vadd.f32 %v75, %v116
  %v133 = vadd.f32 %v76, %v117
  %v134 = vadd.f32 %v77, %v118
  %v135 = vadd.f32 %v78, %v119
  %v136 = vadd.f32 %v79, %v120
  %v137 = vadd.f32 %v80, %v121
  %v138 = vadd.f32 %v81, %v122
  %v139 = vadd.f32 %v82, %v123
  %v140 = vadd.f32 %v83, %v124
  %v141 = vadd.f32 %v84, %v125
  %v142 = vadd.f32 %v85, %v126
  %v143 = vadd.f32 %v86, %v127
  %v144 = vadd.f32 %v87, %v128
  %v145 = vadd.f32 %v88, %v129
  %v146 = vadd.f32 %v89, %v130
  %v147 = vadd.f32 %v90, %v131
  %v148 = vpack.c.bf16 %v133, %v132
  %v149 = vpack.c.bf16 %v135, %v134
  %v150 = vpack.c.bf16 %v137, %v136
  %v151 = vpack.c.bf16 %v139, %v138
  %v152 = vpack.c.bf16 %v141, %v140
  %v153 = vpack.c.bf16 %v143, %v142
  %v154 = vpack.c.bf16 %v145, %v144
  %v155 = vpack.c.bf16 %v147, %v146
  %156 = vst [vmem:[%s7] sm:$0xff] %v148
  %157 = vst [vmem:[%s7 + $0x8] sm:$0xff] %v149
  %158 = vst [vmem:[%s7 + $0x10] sm:$0xff] %v150
  %159 = vst [vmem:[%s7 + $0x18] sm:$0xff] %v151
  %160 = vst [vmem:[%s7 + $0x20] sm:$0xff] %v152
  %161 = vst [vmem:[%s7 + $0x28] sm:$0xff] %v153
  %162 = vst [vmem:[%s7 + $0x30] sm:$0xff] %v154
  %163 = vst [vmem:[%s7 + $0x38] sm:$0xff] %v155
  %v164 = vld [vmem:[%s3] sm:$0xf]
  %v165 = vld [vmem:[%s3 + $0x4] sm:$0xf]
  %v166 = vld [vmem:[%s3 + $0x8] sm:$0xf]
  %v167 = vld [vmem:[%s3 + $0xc] sm:$0xf]
  %v172 = vunpack.c.l.b16 %v164
  %v173 = vunpack.c.l.b16 %v165
  %v174 = vunpack.c.l.b16 %v166
  %v175 = vunpack.c.l.b16 %v167
  %v176 = vpack.c.b16 %v173, %v172
  %v177 = vpack.c.b16 %v175, %v174
  %v186 = vunpack.c.l.b16 %v148
  %v187 = vunpack.c.h.b16 %v148
  %v188 = vunpack.c.l.b16 %v149
  %v189 = vunpack.c.h.b16 %v149
  %v190 = vunpack.c.l.b16 %v150
  %v191 = vunpack.c.h.b16 %v150
  %v192 = vunpack.c.l.b16 %v151
  %v193 = vunpack.c.h.b16 %v151
  %v194 = vunpack.c.l.b16 %v152
  %v195 = vunpack.c.h.b16 %v152
  %v196 = vunpack.c.l.b16 %v153
  %v197 = vunpack.c.h.b16 %v153
  %v198 = vunpack.c.l.b16 %v154
  %v199 = vunpack.c.h.b16 %v154
  %v200 = vunpack.c.l.b16 %v155
  %v201 = vunpack.c.h.b16 %v155
  %v202 = vpack.c.b16 %v190, %v186
  %v203 = vpack.c.b16 %v191, %v187
  %v204 = vpack.c.b16 %v192, %v188
  %v205 = vpack.c.b16 %v193, %v189
  %v206 = vpack.c.b16 %v198, %v194
  %v207 = vpack.c.b16 %v199, %v195
  %v208 = vpack.c.b16 %v200, %v196
  %v209 = vpack.c.b16 %v201, %v197
  %vm218 = vcmask 261120
  %v220 = vsel %vm218, %v176, 0
  %v223 = vsel %vm218, %v177, 0
  %225 = vmatpush.bf16.msra.mxu0 0
  %226 = vmatpush.bf16.msra.mxu0 0
  %227 = vmatpush.bf16.msra.mxu0 0
  %228 = vmatpush.bf16.msra.mxu0 0
  %229 = vmatpush.bf16.msra.mxu0 0
  %230 = vmatpush.bf16.msra.mxu0 0
  %231 = vmatpush.bf16.msra.mxu0 %v206
  %232 = vmatpush.bf16.msra.mxu0 %v202
  %233 = vmatmul.bf16.gmra.mxu0 %v220
  %v234 = vpop.f32.mrf.mxu0
  %v235 = vadd.f32 0.0, %v234
  %v236 = vpop.f32.mrf.mxu0
  %v237 = vadd.f32 0.0, %v236
  %238 = vmatmul.bf16.gmra.mxu0 %v223
  %v239 = vpop.f32.mrf.mxu0
  %v240 = vadd.f32 0.0, %v239
  %v241 = vpop.f32.mrf.mxu0
  %v242 = vadd.f32 0.0, %v241
  %243 = vdwg.mxu0
  %244 = vmatpush.bf16.msra.mxu0 0
  %245 = vmatpush.bf16.msra.mxu0 0
  %246 = vmatpush.bf16.msra.mxu0 0
  %247 = vmatpush.bf16.msra.mxu0 0
  %248 = vmatpush.bf16.msra.mxu0 0
  %249 = vmatpush.bf16.msra.mxu0 0
  %250 = vmatpush.bf16.msra.mxu0 %v207
  %251 = vmatpush.bf16.msra.mxu0 %v203
  %252 = vmatmul.bf16.gmra.mxu0 %v220
  %v253 = vpop.f32.mrf.mxu0
  %v254 = vadd.f32 0.0, %v253
  %v255 = vpop.f32.mrf.mxu0
  %v256 = vadd.f32 0.0, %v255
  %257 = vmatmul.bf16.gmra.mxu0 %v223
  %v258 = vpop.f32.mrf.mxu0
  %v259 = vadd.f32 0.0, %v258
  %v260 = vpop.f32.mrf.mxu0
  %v261 = vadd.f32 0.0, %v260
  %262 = vdwg.mxu0
  %263 = vmatpush.bf16.msra.mxu0 0
  %264 = vmatpush.bf16.msra.mxu0 0
  %265 = vmatpush.bf16.msra.mxu0 0
  %266 = vmatpush.bf16.msra.mxu0 0
  %267 = vmatpush.bf16.msra.mxu0 0
  %268 = vmatpush.bf16.msra.mxu0 0
  %269 = vmatpush.bf16.msra.mxu0 %v208
  %270 = vmatpush.bf16.msra.mxu0 %v204
  %271 = vmatmul.bf16.gmra.mxu0 %v220
  %v272 = vpop.f32.mrf.mxu0
  %v273 = vadd.f32 0.0, %v272
  %v274 = vpop.f32.mrf.mxu0
  %v275 = vadd.f32 0.0, %v274
  %276 = vmatmul.bf16.gmra.mxu0 %v223
  %v277 = vpop.f32.mrf.mxu0
  %v278 = vadd.f32 0.0, %v277
  %v279 = vpop.f32.mrf.mxu0
  %v280 = vadd.f32 0.0, %v279
  %281 = vdwg.mxu0
  %282 = vmatpush.bf16.msra.mxu0 0
  %283 = vmatpush.bf16.msra.mxu0 0
  %284 = vmatpush.bf16.msra.mxu0 0
  %285 = vmatpush.bf16.msra.mxu0 0
  %286 = vmatpush.bf16.msra.mxu0 0
  %287 = vmatpush.bf16.msra.mxu0 0
  %288 = vmatpush.bf16.msra.mxu0 %v209
  %289 = vmatpush.bf16.msra.mxu0 %v205
  %290 = vmatmul.bf16.gmra.mxu0 %v220
  %v291 = vpop.f32.mrf.mxu0
  %v292 = vadd.f32 0.0, %v291
  %v293 = vpop.f32.mrf.mxu0
  %v294 = vadd.f32 0.0, %v293
  %295 = vmatmul.bf16.gmra.mxu0 %v223
  %v296 = vpop.f32.mrf.mxu0
  %v297 = vadd.f32 0.0, %v296
  %v298 = vpop.f32.mrf.mxu0
  %v299 = vadd.f32 0.0, %v298
  %300 = vdwg.mxu0
  %v301 = vtanh.pop %v235
  %v302 = vtanh.pop %v254
  %v303 = vtanh.pop %v273
  %v304 = vtanh.pop %v292
  %v305 = vtanh.pop %v237
  %v306 = vtanh.pop %v256
  %v307 = vtanh.pop %v275
  %v308 = vtanh.pop %v294
  %v309 = vtanh.pop %v240
  %v310 = vtanh.pop %v259
  %v311 = vtanh.pop %v278
  %v312 = vtanh.pop %v297
  %v313 = vtanh.pop %v242
  %v314 = vtanh.pop %v261
  %v315 = vtanh.pop %v280
  %v316 = vtanh.pop %v299
  %v317 = vld [vmem:[%s4] sm:$0xf]
  %v318 = vld [vmem:[%s4 + $0x4] sm:$0xf]
  %v319 = vld [vmem:[%s4 + $0x8] sm:$0xf]
  %v320 = vld [vmem:[%s4 + $0xc] sm:$0xf]
  %v321 = vpack.c.bf16 %v305, %v301
  %v322 = vpack.c.bf16 %v306, %v302
  %v323 = vpack.c.bf16 %v307, %v303
  %v324 = vpack.c.bf16 %v308, %v304
  %v325 = vpack.c.bf16 %v313, %v309
  %v326 = vpack.c.bf16 %v314, %v310
  %v327 = vpack.c.bf16 %v315, %v311
  %v328 = vpack.c.bf16 %v316, %v312
  %v333 = vunpack.c.l.b16 %v317
  %v334 = vunpack.c.l.b16 %v318
  %v335 = vunpack.c.l.b16 %v319
  %v336 = vunpack.c.l.b16 %v320
  %v337 = vpack.c.b16 %v334, %v333
  %v338 = vpack.c.b16 %v336, %v335
  %v340 = vsel %vm218, %v337, 0
  %v343 = vsel %vm218, %v338, 0
  %345 = vmatpush.bf16.msra.mxu0 0
  %346 = vmatpush.bf16.msra.mxu0 0
  %347 = vmatpush.bf16.msra.mxu0 0
  %348 = vmatpush.bf16.msra.mxu0 0
  %349 = vmatpush.bf16.msra.mxu0 0
  %350 = vmatpush.bf16.msra.mxu0 0
  %351 = vmatpush.bf16.msra.mxu0 %v325
  %352 = vmatpush.bf16.msra.mxu0 %v321
  %353 = vmatmul.bf16.gmra.mxu0 %v340
  %v354 = vpop.f32.mrf.mxu0
  %v355 = vadd.f32 0.0, %v354
  %v356 = vpop.f32.mrf.mxu0
  %v357 = vadd.f32 0.0, %v356
  %358 = vmatmul.bf16.gmra.mxu0 %v343
  %v359 = vpop.f32.mrf.mxu0
  %v360 = vadd.f32 0.0, %v359
  %v361 = vpop.f32.mrf.mxu0
  %v362 = vadd.f32 0.0, %v361
  %363 = vdwg.mxu0
  %364 = vmatpush.bf16.msra.mxu0 0
  %365 = vmatpush.bf16.msra.mxu0 0
  %366 = vmatpush.bf16.msra.mxu0 0
  %367 = vmatpush.bf16.msra.mxu0 0
  %368 = vmatpush.bf16.msra.mxu0 0
  %369 = vmatpush.bf16.msra.mxu0 0
  %370 = vmatpush.bf16.msra.mxu0 %v326
  %371 = vmatpush.bf16.msra.mxu0 %v322
  %372 = vmatmul.bf16.gmra.mxu0 %v340
  %v373 = vpop.f32.mrf.mxu0
  %v374 = vadd.f32 0.0, %v373
  %v375 = vpop.f32.mrf.mxu0
  %v376 = vadd.f32 0.0, %v375
  %377 = vmatmul.bf16.gmra.mxu0 %v343
  %v378 = vpop.f32.mrf.mxu0
  %v379 = vadd.f32 0.0, %v378
  %v380 = vpop.f32.mrf.mxu0
  %v381 = vadd.f32 0.0, %v380
  %382 = vdwg.mxu0
  %383 = vmatpush.bf16.msra.mxu0 0
  %384 = vmatpush.bf16.msra.mxu0 0
  %385 = vmatpush.bf16.msra.mxu0 0
  %386 = vmatpush.bf16.msra.mxu0 0
  %387 = vmatpush.bf16.msra.mxu0 0
  %388 = vmatpush.bf16.msra.mxu0 0
  %389 = vmatpush.bf16.msra.mxu0 %v327
  %390 = vmatpush.bf16.msra.mxu0 %v323
  %391 = vmatmul.bf16.gmra.mxu0 %v340
  %v392 = vpop.f32.mrf.mxu0
  %v393 = vadd.f32 0.0, %v392
  %v394 = vpop.f32.mrf.mxu0
  %v395 = vadd.f32 0.0, %v394
  %396 = vmatmul.bf16.gmra.mxu0 %v343
  %v397 = vpop.f32.mrf.mxu0
  %v398 = vadd.f32 0.0, %v397
  %v399 = vpop.f32.mrf.mxu0
  %v400 = vadd.f32 0.0, %v399
  %401 = vdwg.mxu0
  %402 = vmatpush.bf16.msra.mxu0 0
  %403 = vmatpush.bf16.msra.mxu0 0
  %404 = vmatpush.bf16.msra.mxu0 0
  %405 = vmatpush.bf16.msra.mxu0 0
  %406 = vmatpush.bf16.msra.mxu0 0
  %407 = vmatpush.bf16.msra.mxu0 0
  %408 = vmatpush.bf16.msra.mxu0 %v328
  %409 = vmatpush.bf16.msra.mxu0 %v324
  %410 = vmatmul.bf16.gmra.mxu0 %v340
  %v411 = vpop.f32.mrf.mxu0
  %v412 = vadd.f32 0.0, %v411
  %v413 = vpop.f32.mrf.mxu0
  %v414 = vadd.f32 0.0, %v413
  %415 = vmatmul.bf16.gmra.mxu0 %v343
  %v416 = vpop.f32.mrf.mxu0
  %v417 = vadd.f32 0.0, %v416
  %v418 = vpop.f32.mrf.mxu0
  %v419 = vadd.f32 0.0, %v418
  %420 = vdwg.mxu0
  %v421 = vld [vmem:[%s5] sm:$0xf]
  %v423 = vperm.slane %v421, 0
  %v424 = vperm.slane %v421, 1
  %v425 = vperm.slane %v421, 2
  %v426 = vperm.slane %v421, 3
  %v431 = vmul.f32 %v355, %v423
  %v432 = vmul.f32 %v374, %v424
  %v433 = vmul.f32 %v393, %v425
  %v434 = vmul.f32 %v412, %v426
  %v435 = vmul.f32 %v357, %v423
  %v436 = vmul.f32 %v376, %v424
  %v437 = vmul.f32 %v395, %v425
  %v438 = vmul.f32 %v414, %v426
  %v439 = vmul.f32 %v360, %v423
  %v440 = vmul.f32 %v379, %v424
  %v441 = vmul.f32 %v398, %v425
  %v442 = vmul.f32 %v417, %v426
  %v443 = vmul.f32 %v362, %v423
  %v444 = vmul.f32 %v381, %v424
  %v445 = vmul.f32 %v400, %v425
  %v446 = vmul.f32 %v419, %v426
  %447 = vst [vmem:[%s8] sm:$0xff] %v431
  %448 = vst [vmem:[%s8 + $0x8] sm:$0xff] %v432
  %449 = vst [vmem:[%s8 + $0x10] sm:$0xff] %v433
  %450 = vst [vmem:[%s8 + $0x18] sm:$0xff] %v434
  %451 = vst [vmem:[%s8 + $0x20] sm:$0xff] %v435
  %452 = vst [vmem:[%s8 + $0x28] sm:$0xff] %v436
  %453 = vst [vmem:[%s8 + $0x30] sm:$0xff] %v437
  %454 = vst [vmem:[%s8 + $0x38] sm:$0xff] %v438
  %455 = vst [vmem:[%s8 + $0x40] sm:$0xff] %v439
  %456 = vst [vmem:[%s8 + $0x48] sm:$0xff] %v440
  %457 = vst [vmem:[%s8 + $0x50] sm:$0xff] %v441
  %458 = vst [vmem:[%s8 + $0x58] sm:$0xff] %v442
  %459 = vst [vmem:[%s8 + $0x60] sm:$0xff] %v443
  %460 = vst [vmem:[%s8 + $0x68] sm:$0xff] %v444
  %461 = vst [vmem:[%s8 + $0x70] sm:$0xff] %v445
  %462 = vst [vmem:[%s8 + $0x78] sm:$0xff] %v446
  // Predicated region
  $region30: #{fnn2d_forward.5} parent=0 // pred_check
    _
  $region31: #{fnn2d_forward.5} parent=0 // pred_check_branch
    %464 = sbr.rel (0) target = $region33
  $region32: #{fnn2d_forward.5} parent=0 // pred_region
    _
  $region33: #{fnn2d_forward.5} parent=0 // pred_fallthru
    _
  // Predicated region
  $region34: #{fnn2d_forward.5} parent=0 // pred_check
    _
  $region35: #{fnn2d_forward.5} parent=0 // pred_check_branch
    %466 = sbr.rel (0) target = $region37
  $region36: #{fnn2d_forward.5} parent=0 // pred_region
    _
  $region37: #{fnn2d_forward.5} parent=0 // pred_fallthru
    _
  // Predicated region
  $region38: #{fnn2d_forward.5} parent=0 // pred_check
    _
  $region39: #{fnn2d_forward.5} parent=0 // pred_check_branch
    %468 = sbr.rel (0) target = $region41
  $region40: #{fnn2d_forward.5} parent=0 // pred_region
    _
  $region41: #{fnn2d_forward.5} parent=0 // pred_fallthru
    _
  // Predicated region
  $region42: #{fnn2d_forward.5} parent=0 // pred_check
    _
  $region43: #{fnn2d_forward.5} parent=0 // pred_check_branch
    %470 = sbr.rel (0) target = $region45
  $region44: #{fnn2d_forward.5} parent=0 // pred_region
    _
  $region45: #{fnn2d_forward.5} parent=0 // pred_fallthru
    _

// kernel: fnn2d_forward.7
$region0: #{fnn2d_forward.7}
  #allocation0 [shape = 'u32[]', space=smem, size = 0x4, offset = 0x4, fixed_abs, tag = 'smem constant byte address 0x4 - core index']
  #allocation1 [shape = 'u32[72,128]{1,0:T(1,128)}', space=vmem, size = 0x9000, scoped, tag = 'internal scratch']
  #allocation2 [shape = 'f32[1]{0:T(128)S(6)}', space=smem, size = 0x200, scoped, tag = 'scoped memory for fnn2d_forward.7']
  %s0 = inlined_call_operand.<no memory space> [shape: f32[1], index: 0, kind: input, shape index: {}]
  %s1 = inlined_call_operand.vmem [shape: f32[32,512], index: 1, kind: input, shape index: {}]
  %s2 = inlined_call_operand.vmem [shape: bf16[32,512], index: 2, kind: input, shape index: {}]
  %s3 = inlined_call_operand.vmem [shape: bf16[1,32], index: 3, kind: input, shape index: {}]
  %s4 = inlined_call_operand.vmem [shape: f32[1,512], index: 4, kind: input, shape index: {}]
  %s5 = inlined_call_operand.vmem [shape: f32[1,512], index: 5, kind: output, shape index: {}]
  %s6 = sld [smem:[#allocation0]]
  $region30: #{fnn2d_forward.7} parent=0
    _
  %s8 = ssub.s32 1, %s6
  %s9 = scalar_select 0, %s8, %s6
  %10 = sst [smem:[#allocation2]] %s0
  // Predicated region
  $region2: #{fnn2d_forward.7} parent=0 // pred_check
    _
  $region3: #{fnn2d_forward.7} parent=0 // pred_check_branch
    %12 = sbr.rel (0) target = $region5
  $region4: #{fnn2d_forward.7} parent=0 // pred_region
    _
  $region5: #{fnn2d_forward.7} parent=0 // pred_fallthru
    _
  // Predicated region
  $region6: #{fnn2d_forward.7} parent=0 // pred_check
    _
  $region7: #{fnn2d_forward.7} parent=0 // pred_check_branch
    %14 = sbr.rel (0) target = $region9
  $region8: #{fnn2d_forward.7} parent=0 // pred_region
    _
  $region9: #{fnn2d_forward.7} parent=0 // pred_fallthru
    _
  // Predicated region
  $region10: #{fnn2d_forward.7} parent=0 // pred_check
    _
  $region11: #{fnn2d_forward.7} parent=0 // pred_check_branch
    %16 = sbr.rel (0) target = $region13
  $region12: #{fnn2d_forward.7} parent=0 // pred_region
    _
  $region13: #{fnn2d_forward.7} parent=0 // pred_fallthru
    _
  // Predicated region
  $region14: #{fnn2d_forward.7} parent=0 // pred_check
    _
  $region15: #{fnn2d_forward.7} parent=0 // pred_check_branch
    %18 = sbr.rel (0) target = $region17
  $region16: #{fnn2d_forward.7} parent=0 // pred_region
    _
  $region17: #{fnn2d_forward.7} parent=0 // pred_fallthru
    _
  // Predicated region
  $region18: #{fnn2d_forward.7} parent=0 // pred_check
    _
  $region19: #{fnn2d_forward.7} parent=0 // pred_check_branch
    %20 = sbr.rel (0) target = $region21
  $region20: #{fnn2d_forward.7} parent=0 // pred_region
    _
  $region21: #{fnn2d_forward.7} parent=0 // pred_fallthru
    _
  %s22 = sld [smem:[#allocation2]]
  %v23 = vld [vmem:[%s1] sm:$0xff]
  %v24 = vld [vmem:[%s1 + $0x8] sm:$0xff]
  %v25 = vld [vmem:[%s1 + $0x10] sm:$0xff]
  %v26 = vld [vmem:[%s1 + $0x18] sm:$0xff]
  %v27 = vld [vmem:[%s1 + $0x20] sm:$0xff]
  %v28 = vld [vmem:[%s1 + $0x28] sm:$0xff]
  %v29 = vld [vmem:[%s1 + $0x30] sm:$0xff]
  %v30 = vld [vmem:[%s1 + $0x38] sm:$0xff]
  %v31 = vld [vmem:[%s1 + $0x40] sm:$0xff]
  %v32 = vld [vmem:[%s1 + $0x48] sm:$0xff]
  %v33 = vld [vmem:[%s1 + $0x50] sm:$0xff]
  %v34 = vld [vmem:[%s1 + $0x58] sm:$0xff]
  %v35 = vld [vmem:[%s1 + $0x60] sm:$0xff]
  %v36 = vld [vmem:[%s1 + $0x68] sm:$0xff]
  %v37 = vld [vmem:[%s1 + $0x70] sm:$0xff]
  %v38 = vld [vmem:[%s1 + $0x78] sm:$0xff]
  %v39 = vld [vmem:[%s4] sm:$0xf]
  %v41 = vperm.slane %v39, 0
  %v42 = vperm.slane %v39, 1
  %v43 = vperm.slane %v39, 2
  %v44 = vperm.slane %v39, 3
  %v49 = vmul.f32 %v23, %v41
  %v50 = vmul.f32 %v24, %v42
  %v51 = vmul.f32 %v25, %v43
  %v52 = vmul.f32 %v26, %v44
  %v53 = vmul.f32 %v27, %v41
  %v54 = vmul.f32 %v28, %v42
  %v55 = vmul.f32 %v29, %v43
  %v56 = vmul.f32 %v30, %v44
  %v57 = vmul.f32 %v31, %v41
  %v58 = vmul.f32 %v32, %v42
  %v59 = vmul.f32 %v33, %v43
  %v60 = vmul.f32 %v34, %v44
  %v61 = vmul.f32 %v35, %v41
  %v62 = vmul.f32 %v36, %v42
  %v63 = vmul.f32 %v37, %v43
  %v64 = vmul.f32 %v38, %v44
  %s65 = ssub.f32 1.0, %s22
  %v66 = vstv %s65
  %v67 = vmul.f32 %v66, %v49
  %v68 = vmul.f32 %v66, %v50
  %v69 = vmul.f32 %v66, %v51
  %v70 = vmul.f32 %v66, %v52
  %v71 = vmul.f32 %v66, %v53
  %v72 = vmul.f32 %v66, %v54
  %v73 = vmul.f32 %v66, %v55
  %v74 = vmul.f32 %v66, %v56
  %v75 = vmul.f32 %v66, %v57
  %v76 = vmul.f32 %v66, %v58
  %v77 = vmul.f32 %v66, %v59
  %v78 = vmul.f32 %v66, %v60
  %v79 = vmul.f32 %v66, %v61
  %v80 = vmul.f32 %v66, %v62
  %v81 = vmul.f32 %v66, %v63
  %v82 = vmul.f32 %v66, %v64
  %v83 = vld [vmem:[%s2] sm:$0xff]
  %v84 = vld [vmem:[%s2 + $0x8] sm:$0xff]
  %v85 = vld [vmem:[%s2 + $0x10] sm:$0xff]
  %v86 = vld [vmem:[%s2 + $0x18] sm:$0xff]
  %v87 = vld [vmem:[%s2 + $0x20] sm:$0xff]
  %v88 = vld [vmem:[%s2 + $0x28] sm:$0xff]
  %v89 = vld [vmem:[%s2 + $0x30] sm:$0xff]
  %v90 = vld [vmem:[%s2 + $0x38] sm:$0xff]
  %v91 = vunpack.c.l.bf16 %v83
  %v92 = vunpack.c.h.bf16 %v83
  %v93 = vunpack.c.l.bf16 %v84
  %v94 = vunpack.c.h.bf16 %v84
  %v95 = vunpack.c.l.bf16 %v85
  %v96 = vunpack.c.h.bf16 %v85
  %v97 = vunpack.c.l.bf16 %v86
  %v98 = vunpack.c.h.bf16 %v86
  %v99 = vunpack.c.l.bf16 %v87
  %v100 = vunpack.c.h.bf16 %v87
  %v101 = vunpack.c.l.bf16 %v88
  %v102 = vunpack.c.h.bf16 %v88
  %v103 = vunpack.c.l.bf16 %v89
  %v104 = vunpack.c.h.bf16 %v89
  %v105 = vunpack.c.l.bf16 %v90
  %v106 = vunpack.c.h.bf16 %v90
  %v107 = vstv %s22
  %v108 = vmul.f32 %v107, %v91
  %v109 = vmul.f32 %v107, %v92
  %v110 = vmul.f32 %v107, %v93
  %v111 = vmul.f32 %v107, %v94
  %v112 = vmul.f32 %v107, %v95
  %v113 = vmul.f32 %v107, %v96
  %v114 = vmul.f32 %v107, %v97
  %v115 = vmul.f32 %v107, %v98
  %v116 = vmul.f32 %v107, %v99
  %v117 = vmul.f32 %v107, %v100
  %v118 = vmul.f32 %v107, %v101
  %v119 = vmul.f32 %v107, %v102
  %v120 = vmul.f32 %v107, %v103
  %v121 = vmul.f32 %v107, %v104
  %v122 = vmul.f32 %v107, %v105
  %v123 = vmul.f32 %v107, %v106
  %v124 = vadd.f32 %v67, %v108
  %v125 = vadd.f32 %v68, %v109
  %v126 = vadd.f32 %v69, %v110
  %v127 = vadd.f32 %v70, %v111
  %v128 = vadd.f32 %v71, %v112
  %v129 = vadd.f32 %v72, %v113
  %v130 = vadd.f32 %v73, %v114
  %v131 = vadd.f32 %v74, %v115
  %v132 = vadd.f32 %v75, %v116
  %v133 = vadd.f32 %v76, %v117
  %v134 = vadd.f32 %v77, %v118
  %v135 = vadd.f32 %v78, %v119
  %v136 = vadd.f32 %v79, %v120
  %v137 = vadd.f32 %v80, %v121
  %v138 = vadd.f32 %v81, %v122
  %v139 = vadd.f32 %v82, %v123
  %v140 = vld [vmem:[%s3] sm:$0x1]
  %v141 = vpack.c.bf16 %v128, %v124
  %v142 = vpack.c.bf16 %v129, %v125
  %v143 = vpack.c.bf16 %v130, %v126
  %v144 = vpack.c.bf16 %v131, %v127
  %v145 = vpack.c.bf16 %v136, %v132
  %v146 = vpack.c.bf16 %v137, %v133
  %v147 = vpack.c.bf16 %v138, %v134
  %v148 = vpack.c.bf16 %v139, %v135
  %vm149 = vcmask 261120
  %v151 = vsel %vm149, %v140, 0
  %153 = vmatpush.bf16.msra.mxu0 0
  %154 = vmatpush.bf16.msra.mxu0 0
  %155 = vmatpush.bf16.msra.mxu0 0
  %156 = vmatpush.bf16.msra.mxu0 0
  %157 = vmatpush.bf16.msra.mxu0 0
  %158 = vmatpush.bf16.msra.mxu0 0
  %159 = vmatpush.bf16.msra.mxu0 %v145
  %160 = vmatpush.bf16.msra.mxu0 %v141
  %161 = vmatmul.bf16.gmra.mxu0 %v151
  %v162 = vpop.f32.mrf.mxu0
  %v163 = vadd.f32 0.0, %v162
  %v164 = vpop.f32.mrf.mxu0
  %165 = vdwg.mxu0
  %166 = vmatpush.bf16.msra.mxu0 0
  %167 = vmatpush.bf16.msra.mxu0 0
  %168 = vmatpush.bf16.msra.mxu0 0
  %169 = vmatpush.bf16.msra.mxu0 0
  %170 = vmatpush.bf16.msra.mxu0 0
  %171 = vmatpush.bf16.msra.mxu0 0
  %172 = vmatpush.bf16.msra.mxu0 %v146
  %173 = vmatpush.bf16.msra.mxu0 %v142
  %174 = vmatmul.bf16.gmra.mxu0 %v151
  %v175 = vpop.f32.mrf.mxu0
  %v176 = vadd.f32 0.0, %v175
  %v177 = vpop.f32.mrf.mxu0
  %178 = vdwg.mxu0
  %179 = vmatpush.bf16.msra.mxu0 0
  %180 = vmatpush.bf16.msra.mxu0 0
  %181 = vmatpush.bf16.msra.mxu0 0
  %182 = vmatpush.bf16.msra.mxu0 0
  %183 = vmatpush.bf16.msra.mxu0 0
  %184 = vmatpush.bf16.msra.mxu0 0
  %185 = vmatpush.bf16.msra.mxu0 %v147
  %186 = vmatpush.bf16.msra.mxu0 %v143
  %187 = vmatmul.bf16.gmra.mxu0 %v151
  %v188 = vpop.f32.mrf.mxu0
  %v189 = vadd.f32 0.0, %v188
  %v190 = vpop.f32.mrf.mxu0
  %191 = vdwg.mxu0
  %192 = vmatpush.bf16.msra.mxu0 0
  %193 = vmatpush.bf16.msra.mxu0 0
  %194 = vmatpush.bf16.msra.mxu0 0
  %195 = vmatpush.bf16.msra.mxu0 0
  %196 = vmatpush.bf16.msra.mxu0 0
  %197 = vmatpush.bf16.msra.mxu0 0
  %198 = vmatpush.bf16.msra.mxu0 %v148
  %199 = vmatpush.bf16.msra.mxu0 %v144
  %200 = vmatmul.bf16.gmra.mxu0 %v151
  %v201 = vpop.f32.mrf.mxu0
  %v202 = vadd.f32 0.0, %v201
  %v203 = vpop.f32.mrf.mxu0
  %204 = vdwg.mxu0
  %v209 = vrot.slane %v176, 7
  %v210 = vrot.slane %v189, 6
  %v211 = vrot.slane %v202, 5
  %vm212 = vcmask 1040384
  %v213 = vsel %vm212, %v163, %v209
  %vm214 = vcmask 1042434
  %v215 = vsel %vm214, %v210, %v211
  %vm216 = vcmask 1041408
  %v217 = vsel %vm216, %v213, %v215
  %v219 = vlaneseq
  %vm220 = vcmp.ge.s32.totalorder %v219, 0
  %vm221 = vcmp.lt.s32.totalorder %v219, 512
  %vm222 = vmand %vm220, %vm221
  %223 = vst.msk [vmem:[%s5] sm:$0xf] %vm222, %v217
  // Predicated region
  $region22: #{fnn2d_forward.7} parent=0 // pred_check
    _
  $region23: #{fnn2d_forward.7} parent=0 // pred_check_branch
    %225 = sbr.rel (0) target = $region25
  $region24: #{fnn2d_forward.7} parent=0 // pred_region
    _
  $region25: #{fnn2d_forward.7} parent=0 // pred_fallthru
    _
  // Predicated region
  $region26: #{fnn2d_forward.7} parent=0 // pred_check
    _
  $region27: #{fnn2d_forward.7} parent=0 // pred_check_branch
    %227 = sbr.rel (0) target = $region29
  $region28: #{fnn2d_forward.7} parent=0 // pred_region
    _
  $region29: #{fnn2d_forward.7} parent=0 // pred_fallthru
    _

</llo_original>
